<compile_context>
chip_gen: v7x
topology: tpu7x:2x2x1
jax: 0.10.0
libtpu: 0.0.40
codegen_flags: <defaults>
</compile_context>

<pallas_src>
import jax
import jax.numpy as jnp
from jax.experimental import pallas as pl
from jax.experimental.pallas import tpu as pltpu

# --- model dimensions (small, lane-aligned, consistent with the module's structure;
#     real model uses half_in_size = num_ftrs/2, layer_width = 1024) ---
HALF_IN = 64          # half_in_size
LAYER_W = 128         # layer_width
NUM_CLASS = 10        # Num_class
OUT_PAD = 128         # lane-dense padded output width
IN_F = 2 * HALF_IN
COMPUTE_DTYPE = jnp.bfloat16   # matmul operand dtype (accumulation stays f32)


def _round_up(n, m):
    return ((n + m - 1) // m) * m


def _cdiv(a, b):
    return (a + b - 1) // b


# ---------------------------------------------------------------------------
# Kernel
# ---------------------------------------------------------------------------
def spinal_kernel(x_ref,
                  wf_ref, b1_ref,
                  wc2_ref, b2_ref,
                  wc3_ref, b3_ref,
                  wc4_ref, b4_ref,
                  wo4_ref, bo_ref,
                  out_ref):
    f32 = jnp.float32
    cdt = wf_ref.dtype          # compute (matmul operand) dtype
    L = LAYER_W

    # In-kernel f32 -> bf16 cast (single read of f32 x; no wrapper-side cast op).
    x = x_ref[...].astype(cdt)                                    # [TB, 2*HALF_IN]

    # One fused K=2*HALF_IN, N=4*LAYER_W matmul computes all four feature-half
    # contributions (xa@w1 | xb@w2a | xa@w3a | xb@w4a) at once.
    # NOTE: at production dims (2*half_in > MXU K) split this into two dense matmuls
    # xa@[w1|w3a] and xb@[w2a|w4a] instead of the half-zero padded wf.
    h = jnp.dot(x, wf_ref[...], preferred_element_type=f32)       # [TB, 4*L] f32

    # x1 = layer1(xa)
    x1 = h[:, 0 * L:1 * L] + b1_ref[...]

    # Fused chain+head matmul:  x1 @ [w2b | wo1]  -> next chain state + logits contrib.
    c2 = jnp.dot(x1.astype(cdt), wc2_ref[...], preferred_element_type=f32)  # [TB, L+OUT_PAD]
    x2 = h[:, 1 * L:2 * L] + c2[:, :L] + b2_ref[...]
    out = c2[:, L:] + bo_ref[...]

    # x2 @ [w3b | wo2]
    c3 = jnp.dot(x2.astype(cdt), wc3_ref[...], preferred_element_type=f32)
    x3 = h[:, 2 * L:3 * L] + c3[:, :L] + b3_ref[...]
    out = out + c3[:, L:]

    # x3 @ [w4b | wo3]
    c4 = jnp.dot(x3.astype(cdt), wc4_ref[...], preferred_element_type=f32)
    x4 = h[:, 3 * L:4 * L] + c4[:, :L] + b4_ref[...]
    out = out + c4[:, L:]

    # x4's logits contribution (lane-padded head block).
    out = out + jnp.dot(x4.astype(cdt), wo4_ref[...], preferred_element_type=f32)

    out_ref[...] = out.astype(out_ref.dtype)


# ---------------------------------------------------------------------------
# Wrapper
# ---------------------------------------------------------------------------
def spinalnet_forward(x, kparams, *, block_b=512, min_steps=2):
    """x: [B, 2*HALF_IN] float32; kparams: packed kernel params from pack_params().

    block_b: max batch tile.  min_steps=2 guarantees >=2 grid steps so the "parallel"
    batch axis can shard across v7x's two TensorCores (harmless on v5e/v6e).
    """
    B = x.shape[0]
    n_steps = max(min_steps, _cdiv(B, block_b))
    TB = _round_up(_cdiv(B, n_steps), 8)       # pad only to a multiple of 8 per step
    B_pad = n_steps * TB
    if B_pad != B:
        x = jnp.pad(x, ((0, B_pad - B), (0, 0)))   # padded rows sliced off below

    grid = (n_steps,)

    # Cost hint (this head is tiny relative to the ResNet backbone around it).
    flops = 2 * B_pad * (IN_F * 4 * LAYER_W
                         + 3 * LAYER_W * (LAYER_W + OUT_PAD)
                         + LAYER_W * OUT_PAD)
    bytes_accessed = (B_pad * IN_F * x.dtype.itemsize
                      + B_pad * OUT_PAD * 4
                      + sum(int(p.size) * p.dtype.itemsize for p in kparams))

    in_specs = [pl.BlockSpec((TB, IN_F), lambda i: (i, 0))]
    # Weights/biases: full-array blocks with a constant index_map -> VMEM-resident
    # across the whole batch grid.  (At production dims also pass
    # pipeline_mode=pl.Buffered(1) here to halve the invariant-weight footprint.)
    in_specs += [pl.BlockSpec(p.shape, lambda i: (0, 0)) for p in kparams]

    out = pl.pallas_call(
        spinal_kernel,
        out_shape=jax.ShapeDtypeStruct((B_pad, OUT_PAD), jnp.float32),
        grid=grid,
        in_specs=in_specs,
        out_specs=pl.BlockSpec((TB, OUT_PAD), lambda i: (i, 0)),
        compiler_params=pltpu.CompilerParams(
            dimension_semantics=("parallel",),
            vmem_limit_bytes=32 * 1024 * 1024),
        cost_estimate=pl.CostEstimate(
            flops=flops, transcendentals=0, bytes_accessed=bytes_accessed),
    )(x, *kparams)
    return out[:B, :NUM_CLASS]


# ---------------------------------------------------------------------------
# Parameters
# ---------------------------------------------------------------------------
def _linear_params(key, in_f, out_f):
    """PyTorch nn.Linear default init (uniform +-1/sqrt(in_f)); weight stored [in, out]."""
    kw, kb = jax.random.split(key)
    bound = 1.0 / (in_f ** 0.5)
    w = jax.random.uniform(kw, (in_f, out_f), jnp.float32, -bound, bound)
    b = jax.random.uniform(kb, (1, out_f), jnp.float32, -bound, bound)
    return w, b


def make_params(key):
    """Logical (PyTorch-equivalent) f32 parameters."""
    k1, k2, k3, k4, ko = jax.random.split(key, 5)
    w1, b1 = _linear_params(k1, HALF_IN, LAYER_W)
    w2, b2 = _linear_params(k2, HALF_IN + LAYER_W, LAYER_W)
    w3, b3 = _linear_params(k3, HALF_IN + LAYER_W, LAYER_W)
    w4, b4 = _linear_params(k4, HALF_IN + LAYER_W, LAYER_W)
    wo, bo = _linear_params(ko, LAYER_W * 4, NUM_CLASS)
    return (w1, b1, w2, b2, w3, b3, w4, b4, wo, bo)


def pack_params(params, dtype=COMPUTE_DTYPE):
    """Build kernel params:
       wf   = fused feature-half weight  [2H, 4L]   (xa@w1 | xb@w2a | xa@w3a | xb@w4a)
       wc_i = chain+head fused weights   [L, L+OUT_PAD]  ([w_{i}b | wo block i-1])
       wo4  = lane-padded head block for x4  [L, OUT_PAD]
    """
    (w1, b1, w2, b2, w3, b3, w4, b4, wo, bo) = params
    H, L = HALF_IN, LAYER_W

    wf = jnp.zeros((2 * H, 4 * L), jnp.float32)
    wf = wf.at[0:H,     0 * L:1 * L].set(w1)         # xa -> x1
    wf = wf.at[H:2 * H, 1 * L:2 * L].set(w2[:H])     # xb -> x2 contribution
    wf = wf.at[0:H,     2 * L:3 * L].set(w3[:H])     # xa -> x3 contribution
    wf = wf.at[H:2 * H, 3 * L:4 * L].set(w4[:H])     # xb -> x4 contribution

    wo_pad = jnp.zeros((4 * L, OUT_PAD), jnp.float32).at[:, :NUM_CLASS].set(wo)
    bo_pad = jnp.zeros((1, OUT_PAD), jnp.float32).at[:, :NUM_CLASS].set(bo)

    wc2 = jnp.concatenate([w2[H:], wo_pad[0 * L:1 * L]], axis=1)   # [L, L+OUT_PAD]
    wc3 = jnp.concatenate([w3[H:], wo_pad[1 * L:2 * L]], axis=1)
    wc4 = jnp.concatenate([w4[H:], wo_pad[2 * L:3 * L]], axis=1)
    wo4 = wo_pad[3 * L:4 * L]

    return (wf.astype(dtype), b1,
            wc2.astype(dtype), b2,
            wc3.astype(dtype), b3,
            wc4.astype(dtype), b4,
            wo4.astype(dtype), bo_pad)


# ---------------------------------------------------------------------------
# References
# ---------------------------------------------------------------------------
def reference_forward(x, params):
    """Exact f32 PyTorch-semantics forward."""
    (w1, b1, w2, b2, w3, b3, w4, b4, wo, bo) = params
    xa, xb = x[:, :HALF_IN], x[:, HALF_IN:2 * HALF_IN]
    x1 = xa @ w1 + b1
    x2 = jnp.concatenate([xb, x1], axis=1) @ w2 + b2
    x3 = jnp.concatenate([xa, x2], axis=1) @ w3 + b3
    x4 = jnp.concatenate([xb, x3], axis=1) @ w4 + b4
    h = jnp.concatenate([x1, x2, x3, x4], axis=1)
    return h @ wo + bo


def reference_forward_quantized(x, params, dtype=COMPUTE_DTYPE):
    """Emulates the kernel's bf16 matmul operands / f32 accumulation (tight reference)."""
    f32 = jnp.float32
    (w1, b1, w2, b2, w3, b3, w4, b4, wo, bo) = params
    q = lambda a: a.astype(dtype).astype(f32)
    H, L = HALF_IN, LAYER_W
    xq = q(x)
    xa, xb = xq[:, :H], xq[:, H:2 * H]
    x1 = xa @ q(w1) + b1
    x2 = xb @ q(w2[:H]) + q(x1) @ q(w2[H:]) + b2
    x3 = xa @ q(w3[:H]) + q(x2) @ q(w3[H:]) + b3
    x4 = xb @ q(w4[:H]) + q(x3) @ q(w4[H:]) + b4
    return (q(x1) @ q(wo[0 * L:1 * L]) + q(x2) @ q(wo[1 * L:2 * L])
            + q(x3) @ q(wo[2 * L:3 * L]) + q(x4) @ q(wo[3 * L:4 * L]) + bo)


if __name__ == "__main__":
    key = jax.random.PRNGKey(0)
    kx, kp = jax.random.split(key)
    B = 128
    x = jax.random.normal(kx, (B, 2 * HALF_IN), dtype=jnp.float32)

    params = make_params(kp)
    kparams = pack_params(params)

    # n_steps = max(2, cdiv(128, 512)) = 2 -> TB = 64, grid = (2,): exercises the
    # batch pipeline and gives the v7x megacore two parallel steps.
    out = spinalnet_forward(x, kparams, block_b=512)
    out = jax.block_until_ready(out)
    assert out.shape == (B, NUM_CLASS)

    # Tight numerical check against a reference that mirrors the kernel's bf16 operands.
    ref_q = reference_forward_quantized(x, params)
    err_q = float(jnp.max(jnp.abs(out - ref_q)))
    assert err_q < 1e-2, f"mismatch vs quantized reference: max abs err {err_q}"

    # Semantics check against the exact f32 PyTorch-equivalent forward
    # (loose tolerance accounts only for bf16 operand rounding).
    ref = reference_forward(x, params)
    err = float(jnp.max(jnp.abs(out - ref)))
    assert err < 1e-1, f"mismatch vs f32 reference: max abs err {err}"

    print("KERNEL_OK")
</pallas_src>

<mosaic_0001>
module attributes {stable_mosaic.version = 11 : i64} {
  func.func @spinal_kernel(%arg0: i32, %arg1: memref<64x128xf32, #tpu.memory_space<vmem>>, %arg2: memref<128x512xbf16, #tpu.memory_space<vmem>>, %arg3: memref<1x128xf32, #tpu.memory_space<vmem>>, %arg4: memref<128x256xbf16, #tpu.memory_space<vmem>>, %arg5: memref<1x128xf32, #tpu.memory_space<vmem>>, %arg6: memref<128x256xbf16, #tpu.memory_space<vmem>>, %arg7: memref<1x128xf32, #tpu.memory_space<vmem>>, %arg8: memref<128x256xbf16, #tpu.memory_space<vmem>>, %arg9: memref<1x128xf32, #tpu.memory_space<vmem>>, %arg10: memref<128x128xbf16, #tpu.memory_space<vmem>>, %arg11: memref<1x128xf32, #tpu.memory_space<vmem>>, %arg12: memref<64x128xf32, #tpu.memory_space<vmem>>) attributes {dimension_semantics = [#tpu.dimension_semantics<parallel>], iteration_bounds = array<i64: 2>, scalar_prefetch = 0 : i64, scratch_operands = 0 : i64, tpu.core_type = #tpu.core_type<tc>, window_params = [{transform_indices = @transform_0, window_bounds = array<i64: 64, 128>}, {pipeline_mode = #tpu.pipeline_mode<synchronous>, transform_indices = @transform_1, window_bounds = array<i64: 128, 512>}, {pipeline_mode = #tpu.pipeline_mode<synchronous>, transform_indices = @transform_2, window_bounds = array<i64: 1, 128>}, {pipeline_mode = #tpu.pipeline_mode<synchronous>, transform_indices = @transform_3, window_bounds = array<i64: 128, 256>}, {pipeline_mode = #tpu.pipeline_mode<synchronous>, transform_indices = @transform_4, window_bounds = array<i64: 1, 128>}, {pipeline_mode = #tpu.pipeline_mode<synchronous>, transform_indices = @transform_5, window_bounds = array<i64: 128, 256>}, {pipeline_mode = #tpu.pipeline_mode<synchronous>, transform_indices = @transform_6, window_bounds = array<i64: 1, 128>}, {pipeline_mode = #tpu.pipeline_mode<synchronous>, transform_indices = @transform_7, window_bounds = array<i64: 128, 256>}, {pipeline_mode = #tpu.pipeline_mode<synchronous>, transform_indices = @transform_8, window_bounds = array<i64: 1, 128>}, {pipeline_mode = #tpu.pipeline_mode<synchronous>, transform_indices = @transform_9, window_bounds = array<i64: 128, 128>}, {pipeline_mode = #tpu.pipeline_mode<synchronous>, transform_indices = @transform_10, window_bounds = array<i64: 1, 128>}, {transform_indices = @transform_11, window_bounds = array<i64: 64, 128>}]} {
    %c0 = arith.constant 0 : index
    %c0_0 = arith.constant 0 : index
    %0 = vector.load %arg1[%c0, %c0_0] : memref<64x128xf32, #tpu.memory_space<vmem>>, vector<64x128xf32>
    %1 = arith.truncf %0 : vector<64x128xf32> to vector<64x128xbf16>
    %c0_1 = arith.constant 0 : index
    %c0_2 = arith.constant 0 : index
    %2 = vector.load %arg2[%c0_1, %c0_2] : memref<128x512xbf16, #tpu.memory_space<vmem>>, vector<128x512xbf16>
    %cst = arith.constant dense<0.000000e+00> : vector<64x512xf32>
    %3 = tpu.matmul %1, %2, %cst {dimension_numbers = #tpu.dot_dimension_numbers<[1], [0], [0], [1], [0, 0, 1, 1], [], []>} : vector<64x128xbf16>, vector<128x512xbf16>, vector<64x512xf32> -> vector<64x512xf32>
    %4 = vector.extract_strided_slice %3 {offsets = [0, 0], sizes = [64, 128], strides = [1, 1]} : vector<64x512xf32> to vector<64x128xf32>
    %c0_3 = arith.constant 0 : index
    %c0_4 = arith.constant 0 : index
    %5 = vector.load %arg3[%c0_3, %c0_4] : memref<1x128xf32, #tpu.memory_space<vmem>>, vector<1x128xf32>
    %6 = vector.broadcast %5 : vector<1x128xf32> to vector<64x128xf32>
    %7 = arith.addf %4, %6 : vector<64x128xf32>
    %8 = arith.truncf %7 : vector<64x128xf32> to vector<64x128xbf16>
    %c0_5 = arith.constant 0 : index
    %c0_6 = arith.constant 0 : index
    %9 = vector.load %arg4[%c0_5, %c0_6] : memref<128x256xbf16, #tpu.memory_space<vmem>>, vector<128x256xbf16>
    %cst_7 = arith.constant dense<0.000000e+00> : vector<64x256xf32>
    %10 = tpu.matmul %8, %9, %cst_7 {dimension_numbers = #tpu.dot_dimension_numbers<[1], [0], [0], [1], [0, 0, 1, 1], [], []>} : vector<64x128xbf16>, vector<128x256xbf16>, vector<64x256xf32> -> vector<64x256xf32>
    %11 = vector.extract_strided_slice %3 {offsets = [0, 128], sizes = [64, 128], strides = [1, 1]} : vector<64x512xf32> to vector<64x128xf32>
    %12 = vector.extract_strided_slice %10 {offsets = [0, 0], sizes = [64, 128], strides = [1, 1]} : vector<64x256xf32> to vector<64x128xf32>
    %13 = arith.addf %11, %12 : vector<64x128xf32>
    %c0_8 = arith.constant 0 : index
    %c0_9 = arith.constant 0 : index
    %14 = vector.load %arg5[%c0_8, %c0_9] : memref<1x128xf32, #tpu.memory_space<vmem>>, vector<1x128xf32>
    %15 = vector.broadcast %14 : vector<1x128xf32> to vector<64x128xf32>
    %16 = arith.addf %13, %15 : vector<64x128xf32>
    %17 = vector.extract_strided_slice %10 {offsets = [0, 128], sizes = [64, 128], strides = [1, 1]} : vector<64x256xf32> to vector<64x128xf32>
    %c0_10 = arith.constant 0 : index
    %c0_11 = arith.constant 0 : index
    %18 = vector.load %arg11[%c0_10, %c0_11] : memref<1x128xf32, #tpu.memory_space<vmem>>, vector<1x128xf32>
    %19 = vector.broadcast %18 : vector<1x128xf32> to vector<64x128xf32>
    %20 = arith.addf %17, %19 : vector<64x128xf32>
    %21 = arith.truncf %16 : vector<64x128xf32> to vector<64x128xbf16>
    %c0_12 = arith.constant 0 : index
    %c0_13 = arith.constant 0 : index
    %22 = vector.load %arg6[%c0_12, %c0_13] : memref<128x256xbf16, #tpu.memory_space<vmem>>, vector<128x256xbf16>
    %cst_14 = arith.constant dense<0.000000e+00> : vector<64x256xf32>
    %23 = tpu.matmul %21, %22, %cst_14 {dimension_numbers = #tpu.dot_dimension_numbers<[1], [0], [0], [1], [0, 0, 1, 1], [], []>} : vector<64x128xbf16>, vector<128x256xbf16>, vector<64x256xf32> -> vector<64x256xf32>
    %24 = vector.extract_strided_slice %3 {offsets = [0, 256], sizes = [64, 128], strides = [1, 1]} : vector<64x512xf32> to vector<64x128xf32>
    %25 = vector.extract_strided_slice %23 {offsets = [0, 0], sizes = [64, 128], strides = [1, 1]} : vector<64x256xf32> to vector<64x128xf32>
    %26 = arith.addf %24, %25 : vector<64x128xf32>
    %c0_15 = arith.constant 0 : index
    %c0_16 = arith.constant 0 : index
    %27 = vector.load %arg7[%c0_15, %c0_16] : memref<1x128xf32, #tpu.memory_space<vmem>>, vector<1x128xf32>
    %28 = vector.broadcast %27 : vector<1x128xf32> to vector<64x128xf32>
    %29 = arith.addf %26, %28 : vector<64x128xf32>
    %30 = vector.extract_strided_slice %23 {offsets = [0, 128], sizes = [64, 128], strides = [1, 1]} : vector<64x256xf32> to vector<64x128xf32>
    %31 = arith.addf %20, %30 : vector<64x128xf32>
    %32 = arith.truncf %29 : vector<64x128xf32> to vector<64x128xbf16>
    %c0_17 = arith.constant 0 : index
    %c0_18 = arith.constant 0 : index
    %33 = vector.load %arg8[%c0_17, %c0_18] : memref<128x256xbf16, #tpu.memory_space<vmem>>, vector<128x256xbf16>
    %cst_19 = arith.constant dense<0.000000e+00> : vector<64x256xf32>
    %34 = tpu.matmul %32, %33, %cst_19 {dimension_numbers = #tpu.dot_dimension_numbers<[1], [0], [0], [1], [0, 0, 1, 1], [], []>} : vector<64x128xbf16>, vector<128x256xbf16>, vector<64x256xf32> -> vector<64x256xf32>
    %35 = vector.extract_strided_slice %3 {offsets = [0, 384], sizes = [64, 128], strides = [1, 1]} : vector<64x512xf32> to vector<64x128xf32>
    %36 = vector.extract_strided_slice %34 {offsets = [0, 0], sizes = [64, 128], strides = [1, 1]} : vector<64x256xf32> to vector<64x128xf32>
    %37 = arith.addf %35, %36 : vector<64x128xf32>
    %c0_20 = arith.constant 0 : index
    %c0_21 = arith.constant 0 : index
    %38 = vector.load %arg9[%c0_20, %c0_21] : memref<1x128xf32, #tpu.memory_space<vmem>>, vector<1x128xf32>
    %39 = vector.broadcast %38 : vector<1x128xf32> to vector<64x128xf32>
    %40 = arith.addf %37, %39 : vector<64x128xf32>
    %41 = vector.extract_strided_slice %34 {offsets = [0, 128], sizes = [64, 128], strides = [1, 1]} : vector<64x256xf32> to vector<64x128xf32>
    %42 = arith.addf %31, %41 : vector<64x128xf32>
    %43 = arith.truncf %40 : vector<64x128xf32> to vector<64x128xbf16>
    %c0_22 = arith.constant 0 : index
    %c0_23 = arith.constant 0 : index
    %44 = vector.load %arg10[%c0_22, %c0_23] : memref<128x128xbf16, #tpu.memory_space<vmem>>, vector<128x128xbf16>
    %cst_24 = arith.constant dense<0.000000e+00> : vector<64x128xf32>
    %45 = tpu.matmul %43, %44, %cst_24 {dimension_numbers = #tpu.dot_dimension_numbers<[1], [0], [0], [1], [0, 0, 1, 1], [], []>} : vector<64x128xbf16>, vector<128x128xbf16>, vector<64x128xf32> -> vector<64x128xf32>
    %46 = arith.addf %42, %45 : vector<64x128xf32>
    %c0_25 = arith.constant 0 : index
    %c0_26 = arith.constant 0 : index
    %47 = vector.load %arg12[%c0_25, %c0_26] : memref<64x128xf32, #tpu.memory_space<vmem>>, vector<64x128xf32>
    tpu.vector_store %arg12[%c0_25, %c0_26], %46 {strides = array<i32>} : memref<64x128xf32, #tpu.memory_space<vmem>>, vector<64x128xf32>,
    return
  }
  func.func @transform_0(%arg0: i32) -> (i32, i32) {
    %c0_i32 = arith.constant 0 : i32
    %c0_i32_0 = arith.constant 0 : i32
    return %arg0, %c0_i32 : i32, i32
  }
  func.func @transform_1(%arg0: i32) -> (i32, i32) {
    %c0_i32 = arith.constant 0 : i32
    %c0_i32_0 = arith.constant 0 : i32
    %c0_i32_1 = arith.constant 0 : i32
    return %c0_i32, %c0_i32_0 : i32, i32
  }
  func.func @transform_2(%arg0: i32) -> (i32, i32) {
    %c0_i32 = arith.constant 0 : i32
    %c0_i32_0 = arith.constant 0 : i32
    %c0_i32_1 = arith.constant 0 : i32
    return %c0_i32, %c0_i32_0 : i32, i32
  }
  func.func @transform_3(%arg0: i32) -> (i32, i32) {
    %c0_i32 = arith.constant 0 : i32
    %c0_i32_0 = arith.constant 0 : i32
    %c0_i32_1 = arith.constant 0 : i32
    return %c0_i32, %c0_i32_0 : i32, i32
  }
  func.func @transform_4(%arg0: i32) -> (i32, i32) {
    %c0_i32 = arith.constant 0 : i32
    %c0_i32_0 = arith.constant 0 : i32
    %c0_i32_1 = arith.constant 0 : i32
    return %c0_i32, %c0_i32_0 : i32, i32
  }
  func.func @transform_5(%arg0: i32) -> (i32, i32) {
    %c0_i32 = arith.constant 0 : i32
    %c0_i32_0 = arith.constant 0 : i32
    %c0_i32_1 = arith.constant 0 : i32
    return %c0_i32, %c0_i32_0 : i32, i32
  }
  func.func @transform_6(%arg0: i32) -> (i32, i32) {
    %c0_i32 = arith.constant 0 : i32
    %c0_i32_0 = arith.constant 0 : i32
    %c0_i32_1 = arith.constant 0 : i32
    return %c0_i32, %c0_i32_0 : i32, i32
  }
  func.func @transform_7(%arg0: i32) -> (i32, i32) {
    %c0_i32 = arith.constant 0 : i32
    %c0_i32_0 = arith.constant 0 : i32
    %c0_i32_1 = arith.constant 0 : i32
    return %c0_i32, %c0_i32_0 : i32, i32
  }
  func.func @transform_8(%arg0: i32) -> (i32, i32) {
    %c0_i32 = arith.constant 0 : i32
    %c0_i32_0 = arith.constant 0 : i32
    %c0_i32_1 = arith.constant 0 : i32
    return %c0_i32, %c0_i32_0 : i32, i32
  }
  func.func @transform_9(%arg0: i32) -> (i32, i32) {
    %c0_i32 = arith.constant 0 : i32
    %c0_i32_0 = arith.constant 0 : i32
    %c0_i32_1 = arith.constant 0 : i32
    return %c0_i32, %c0_i32_0 : i32, i32
  }
  func.func @transform_10(%arg0: i32) -> (i32, i32) {
    %c0_i32 = arith.constant 0 : i32
    %c0_i32_0 = arith.constant 0 : i32
    %c0_i32_1 = arith.constant 0 : i32
    return %c0_i32, %c0_i32_0 : i32, i32
  }
  func.func @transform_11(%arg0: i32) -> (i32, i32) {
    %c0_i32 = arith.constant 0 : i32
    %c0_i32_0 = arith.constant 0 : i32
    return %arg0, %c0_i32 : i32, i32
  }
}

</mosaic_0001>

<llo_original>
// kernel: tpu_custom_call.1
$region0: #{tpu_custom_call.1}
  #allocation0 [shape = 'u32[]', space=smem, size = 0x4, offset = 0x4, fixed_abs, tag = 'smem constant byte address 0x4 - core index']
  #allocation1 [shape = 'u32[144,128]{1,0:T(1,128)}', space=vmem, size = 0x12000, scoped, tag = 'internal scratch']
  %s0 = inlined_call_operand.hbm [shape: f32[128,128], index: 0, kind: input, shape index: {}]
  %s1 = inlined_call_operand.hbm [shape: bf16[128,512], index: 1, kind: input, shape index: {}]
  %s2 = inlined_call_operand.vmem [shape: f32[1,128], index: 2, kind: input, shape index: {}]
  %s3 = inlined_call_operand.hbm [shape: bf16[128,256], index: 3, kind: input, shape index: {}]
  %s4 = inlined_call_operand.vmem [shape: f32[1,128], index: 4, kind: input, shape index: {}]
  %s5 = inlined_call_operand.hbm [shape: bf16[128,256], index: 5, kind: input, shape index: {}]
  %s6 = inlined_call_operand.vmem [shape: f32[1,128], index: 6, kind: input, shape index: {}]
  %s7 = inlined_call_operand.hbm [shape: bf16[128,256], index: 7, kind: input, shape index: {}]
  %s8 = inlined_call_operand.vmem [shape: f32[1,128], index: 8, kind: input, shape index: {}]
  %s9 = inlined_call_operand.hbm [shape: bf16[128,128], index: 9, kind: input, shape index: {}]
  %s10 = inlined_call_operand.vmem [shape: f32[1,128], index: 10, kind: input, shape index: {}]
  %s11 = inlined_call_operand.hbm [shape: f32[128,128], index: 11, kind: output, shape index: {}]
  %s12 = sld [smem:[#allocation0]]
  $region101: #{tpu_custom_call.1} parent=0
    _
  %s14 = ssub.s32 1, %s12
  %s15 = scalar_select 0, %s14, %s12
  $region1: #{tpu_custom_call.1} parent=0
    #allocation2 [shape = 'u8[65536]{0}', space=vmem, size = 0x10000, scoped, tag = 'input window, operand 0']
    #allocation3 [shape = 's32[2]{0}', space=sflag, size = 0x8, scoped, tag = 'scoped memory for tpu_custom_call.1']
    #allocation4 [shape = 's32[2]{0}', space=sflag, size = 0x8, scoped, tag = 'scoped memory for tpu_custom_call.1']
    #allocation5 [shape = 'u8[131072]{0}', space=vmem, size = 0x20000, scoped, tag = 'input window, operand 1, single buffered']
    #allocation6 [shape = 's32[1]{0}', space=sflag, size = 0x4, scoped, tag = 'scoped memory for tpu_custom_call.1']
    #allocation7 [shape = 'u8[65536]{0}', space=vmem, size = 0x10000, scoped, tag = 'input window, operand 3, single buffered']
    #allocation8 [shape = 'u8[65536]{0}', space=vmem, size = 0x10000, scoped, tag = 'input window, operand 5, single buffered']
    #allocation9 [shape = 's32[1]{0}', space=sflag, size = 0x4, scoped, tag = 'scoped memory for tpu_custom_call.1']
    #allocation10 [shape = 'u8[65536]{0}', space=vmem, size = 0x10000, scoped, tag = 'input window, operand 7, single buffered']
    #allocation11 [shape = 'u8[32768]{0}', space=vmem, size = 0x8000, scoped, tag = 'input window, operand 9, single buffered']
    #allocation12 [shape = 's32[1]{0}', space=sflag, size = 0x4, scoped, tag = 'scoped memory for tpu_custom_call.1']
    #allocation13 [shape = 'u8[65536]{0}', space=vmem, size = 0x10000, scoped, tag = 'output window, operand 0']
    %16 = vsyncpa [#allocation3], 0
    %s17 = scalar_lea.sflag [#allocation3], 1
    %18 = vsyncpa %s17, 0
    %19 = vsyncpa [#allocation6], 0
    %20 = vsyncpa [#allocation9], 0
    %21 = vsyncpa [#allocation12], 0
    %22 = vsyncpa [#allocation4], 0
    %s23 = scalar_lea.sflag [#allocation4], 1
    %24 = vsyncpa %s23, 0
    loop: start=0, step=1, limit=4
    $region2: #{tpu_custom_call.1} parent=1 // loop_pre_header
      _
    $region3: #{tpu_custom_call.1} parent=1 // loop_header
      %s26 = sphi 0, %s30
      %p27 = scmp.ge.s32.totalorder %s26, 4
      %s36 = sphi 0, %s38
      %s39 = sphi 0, %s36
      %s40 = sphi 0, %s39
      %s56 = sphi 0, %s40
      %s60 = sphi 0, %s60
      %s62 = sphi 0, %s60
      %s63 = sphi 0, %s62
      %s77 = sphi 0, %s63
      %s81 = sphi 0, %s81
      %s83 = sphi 0, %s81
      %s84 = sphi 0, %s83
      %s98 = sphi 0, %s84
      %s102 = sphi 0, %s102
      %s104 = sphi 0, %s102
      %s105 = sphi 0, %s104
      %s119 = sphi 0, %s105
      %s123 = sphi 0, %s123
      %s125 = sphi 0, %s123
      %s126 = sphi 0, %s125
      %s140 = sphi 0, %s126
      %s144 = sphi 0, %s144
      %s146 = sphi 0, %s144
      %s147 = sphi 0, %s146
      %s161 = sphi 0, %s147
      %s165 = sphi 0, %s165
      %s167 = sphi 0, %s165
      %s168 = sphi 0, %s167
      %s182 = sphi 0, %s168
      %s186 = sphi 0, %s186
      %s188 = sphi 0, %s186
      %s189 = sphi 0, %s188
      %s203 = sphi 0, %s189
      %s207 = sphi 0, %s207
      %s209 = sphi 0, %s207
      %s210 = sphi 0, %s209
      %s224 = sphi 0, %s210
      %s228 = sphi 0, %s228
      %s230 = sphi 0, %s228
      %s231 = sphi 0, %s230
      %s245 = sphi 0, %s231
      %s249 = sphi 0, %s249
      %s251 = sphi 0, %s249
      %s252 = sphi 0, %s251
      %s266 = sphi 0, %s252
      %s272 = sphi 0, %s274
      %s275 = sphi 0, %s272
      %s276 = sphi 0, %s275
      %s292 = sphi 0, %s276
    $region4: #{tpu_custom_call.1} parent=1 // loop_header_branch
      %29 = sbr.rel (%p27) target = $region8
    $region5: #{tpu_custom_call.1} parent=1 // loop_body
      %s31 = ssub.s32 %s26, 1
      %s32 = ssub.s32 %s26, 2
      %s33 = sadd.s32 %s26, 1
      %s34 = ssub.s32 %s26, %s33
      %p35 = scmp.eq.s32.totalorder %s34, 0
      %s37 = sadd.s32 %s36, 1
      %s38 = scalar_select %p35, %s36, %s37
      %p41 = pneg %p35
      %p42 = scmp.eq.s32.totalorder %s26, 1
      %p43 = por %p41, %p42
      %p44 = scmp.ne.s32.totalorder %s36, %s39
      %p45 = scmp.eq.s32.totalorder %s26, 0
      %p46 = por %p44, %p45
      %p47 = scmp.ne.s32.totalorder %s36, %s39
      %p48 = scmp.eq.s32.totalorder %s31, 1
      %p49 = por %p47, %p48
      %p50 = scmp.ne.s32.totalorder %s39, %s40
      %p51 = scmp.eq.s32.totalorder %s31, 0
      %p52 = por %p50, %p51
      %p53 = scmp.ne.s32.totalorder %s39, %s40
      %p54 = scmp.eq.s32.totalorder %s32, 1
      %p55 = por %p53, %p54
      %p57 = scmp.ne.s32.totalorder %s40, %s56
      %p58 = scmp.eq.s32.totalorder %s32, 0
      %p59 = por %p57, %p58
      %s61 = sadd.s32 %s60, 1
      %p64 = scmp.eq.s32.totalorder %s26, 1
      %p65 = scmp.ne.s32.totalorder %s60, %s62
      %p66 = scmp.eq.s32.totalorder %s26, 0
      %p67 = por %p65, %p66
      %p68 = scmp.ne.s32.totalorder %s60, %s62
      %p69 = scmp.eq.s32.totalorder %s31, 1
      %p70 = por %p68, %p69
      %p71 = scmp.ne.s32.totalorder %s62, %s63
      %p72 = scmp.eq.s32.totalorder %s31, 0
      %p73 = por %p71, %p72
      %p74 = scmp.ne.s32.totalorder %s62, %s63
      %p75 = scmp.eq.s32.totalorder %s32, 1
      %p76 = por %p74, %p75
      %p78 = scmp.ne.s32.totalorder %s63, %s77
      %p79 = scmp.eq.s32.totalorder %s32, 0
      %p80 = por %p78, %p79
      %s82 = sadd.s32 %s81, 1
      %p85 = scmp.eq.s32.totalorder %s26, 1
      %p86 = scmp.ne.s32.totalorder %s81, %s83
      %p87 = scmp.eq.s32.totalorder %s26, 0
      %p88 = por %p86, %p87
      %p89 = scmp.ne.s32.totalorder %s81, %s83
      %p90 = scmp.eq.s32.totalorder %s31, 1
      %p91 = por %p89, %p90
      %p92 = scmp.ne.s32.totalorder %s83, %s84
      %p93 = scmp.eq.s32.totalorder %s31, 0
      %p94 = por %p92, %p93
      %p95 = scmp.ne.s32.totalorder %s83, %s84
      %p96 = scmp.eq.s32.totalorder %s32, 1
      %p97 = por %p95, %p96
      %p99 = scmp.ne.s32.totalorder %s84, %s98
      %p100 = scmp.eq.s32.totalorder %s32, 0
      %p101 = por %p99, %p100
      %s103 = sadd.s32 %s102, 1
      %p106 = scmp.eq.s32.totalorder %s26, 1
      %p107 = scmp.ne.s32.totalorder %s102, %s104
      %p108 = scmp.eq.s32.totalorder %s26, 0
      %p109 = por %p107, %p108
      %p110 = scmp.ne.s32.totalorder %s102, %s104
      %p111 = scmp.eq.s32.totalorder %s31, 1
      %p112 = por %p110, %p111
      %p113 = scmp.ne.s32.totalorder %s104, %s105
      %p114 = scmp.eq.s32.totalorder %s31, 0
      %p115 = por %p113, %p114
      %p116 = scmp.ne.s32.totalorder %s104, %s105
      %p117 = scmp.eq.s32.totalorder %s32, 1
      %p118 = por %p116, %p117
      %p120 = scmp.ne.s32.totalorder %s105, %s119
      %p121 = scmp.eq.s32.totalorder %s32, 0
      %p122 = por %p120, %p121
      %s124 = sadd.s32 %s123, 1
      %p127 = scmp.eq.s32.totalorder %s26, 1
      %p128 = scmp.ne.s32.totalorder %s123, %s125
      %p129 = scmp.eq.s32.totalorder %s26, 0
      %p130 = por %p128, %p129
      %p131 = scmp.ne.s32.totalorder %s123, %s125
      %p132 = scmp.eq.s32.totalorder %s31, 1
      %p133 = por %p131, %p132
      %p134 = scmp.ne.s32.totalorder %s125, %s126
      %p135 = scmp.eq.s32.totalorder %s31, 0
      %p136 = por %p134, %p135
      %p137 = scmp.ne.s32.totalorder %s125, %s126
      %p138 = scmp.eq.s32.totalorder %s32, 1
      %p139 = por %p137, %p138
      %p141 = scmp.ne.s32.totalorder %s126, %s140
      %p142 = scmp.eq.s32.totalorder %s32, 0
      %p143 = por %p141, %p142
      %s145 = sadd.s32 %s144, 1
      %p148 = scmp.eq.s32.totalorder %s26, 1
      %p149 = scmp.ne.s32.totalorder %s144, %s146
      %p150 = scmp.eq.s32.totalorder %s26, 0
      %p151 = por %p149, %p150
      %p152 = scmp.ne.s32.totalorder %s144, %s146
      %p153 = scmp.eq.s32.totalorder %s31, 1
      %p154 = por %p152, %p153
      %p155 = scmp.ne.s32.totalorder %s146, %s147
      %p156 = scmp.eq.s32.totalorder %s31, 0
      %p157 = por %p155, %p156
      %p158 = scmp.ne.s32.totalorder %s146, %s147
      %p159 = scmp.eq.s32.totalorder %s32, 1
      %p160 = por %p158, %p159
      %p162 = scmp.ne.s32.totalorder %s147, %s161
      %p163 = scmp.eq.s32.totalorder %s32, 0
      %p164 = por %p162, %p163
      %s166 = sadd.s32 %s165, 1
      %p169 = scmp.eq.s32.totalorder %s26, 1
      %p170 = scmp.ne.s32.totalorder %s165, %s167
      %p171 = scmp.eq.s32.totalorder %s26, 0
      %p172 = por %p170, %p171
      %p173 = scmp.ne.s32.totalorder %s165, %s167
      %p174 = scmp.eq.s32.totalorder %s31, 1
      %p175 = por %p173, %p174
      %p176 = scmp.ne.s32.totalorder %s167, %s168
      %p177 = scmp.eq.s32.totalorder %s31, 0
      %p178 = por %p176, %p177
      %p179 = scmp.ne.s32.totalorder %s167, %s168
      %p180 = scmp.eq.s32.totalorder %s32, 1
      %p181 = por %p179, %p180
      %p183 = scmp.ne.s32.totalorder %s168, %s182
      %p184 = scmp.eq.s32.totalorder %s32, 0
      %p185 = por %p183, %p184
      %s187 = sadd.s32 %s186, 1
      %p190 = scmp.eq.s32.totalorder %s26, 1
      %p191 = scmp.ne.s32.totalorder %s186, %s188
      %p192 = scmp.eq.s32.totalorder %s26, 0
      %p193 = por %p191, %p192
      %p194 = scmp.ne.s32.totalorder %s186, %s188
      %p195 = scmp.eq.s32.totalorder %s31, 1
      %p196 = por %p194, %p195
      %p197 = scmp.ne.s32.totalorder %s188, %s189
      %p198 = scmp.eq.s32.totalorder %s31, 0
      %p199 = por %p197, %p198
      %p200 = scmp.ne.s32.totalorder %s188, %s189
      %p201 = scmp.eq.s32.totalorder %s32, 1
      %p202 = por %p200, %p201
      %p204 = scmp.ne.s32.totalorder %s189, %s203
      %p205 = scmp.eq.s32.totalorder %s32, 0
      %p206 = por %p204, %p205
      %s208 = sadd.s32 %s207, 1
      %p211 = scmp.eq.s32.totalorder %s26, 1
      %p212 = scmp.ne.s32.totalorder %s207, %s209
      %p213 = scmp.eq.s32.totalorder %s26, 0
      %p214 = por %p212, %p213
      %p215 = scmp.ne.s32.totalorder %s207, %s209
      %p216 = scmp.eq.s32.totalorder %s31, 1
      %p217 = por %p215, %p216
      %p218 = scmp.ne.s32.totalorder %s209, %s210
      %p219 = scmp.eq.s32.totalorder %s31, 0
      %p220 = por %p218, %p219
      %p221 = scmp.ne.s32.totalorder %s209, %s210
      %p222 = scmp.eq.s32.totalorder %s32, 1
      %p223 = por %p221, %p222
      %p225 = scmp.ne.s32.totalorder %s210, %s224
      %p226 = scmp.eq.s32.totalorder %s32, 0
      %p227 = por %p225, %p226
      %s229 = sadd.s32 %s228, 1
      %p232 = scmp.eq.s32.totalorder %s26, 1
      %p233 = scmp.ne.s32.totalorder %s228, %s230
      %p234 = scmp.eq.s32.totalorder %s26, 0
      %p235 = por %p233, %p234
      %p236 = scmp.ne.s32.totalorder %s228, %s230
      %p237 = scmp.eq.s32.totalorder %s31, 1
      %p238 = por %p236, %p237
      %p239 = scmp.ne.s32.totalorder %s230, %s231
      %p240 = scmp.eq.s32.totalorder %s31, 0
      %p241 = por %p239, %p240
      %p242 = scmp.ne.s32.totalorder %s230, %s231
      %p243 = scmp.eq.s32.totalorder %s32, 1
      %p244 = por %p242, %p243
      %p246 = scmp.ne.s32.totalorder %s231, %s245
      %p247 = scmp.eq.s32.totalorder %s32, 0
      %p248 = por %p246, %p247
      %s250 = sadd.s32 %s249, 1
      %p253 = scmp.eq.s32.totalorder %s26, 1
      %p254 = scmp.ne.s32.totalorder %s249, %s251
      %p255 = scmp.eq.s32.totalorder %s26, 0
      %p256 = por %p254, %p255
      %p257 = scmp.ne.s32.totalorder %s249, %s251
      %p258 = scmp.eq.s32.totalorder %s31, 1
      %p259 = por %p257, %p258
      %p260 = scmp.ne.s32.totalorder %s251, %s252
      %p261 = scmp.eq.s32.totalorder %s31, 0
      %p262 = por %p260, %p261
      %p263 = scmp.ne.s32.totalorder %s251, %s252
      %p264 = scmp.eq.s32.totalorder %s32, 1
      %p265 = por %p263, %p264
      %p267 = scmp.ne.s32.totalorder %s252, %s266
      %p268 = scmp.eq.s32.totalorder %s32, 0
      %p269 = por %p267, %p268
      %s270 = ssub.s32 %s26, %s33
      %p271 = scmp.eq.s32.totalorder %s270, 0
      %s273 = sadd.s32 %s272, 1
      %s274 = scalar_select %p271, %s272, %s273
      %p277 = pneg %p271
      %p278 = scmp.eq.s32.totalorder %s26, 1
      %p279 = por %p277, %p278
      %p280 = scmp.ne.s32.totalorder %s272, %s275
      %p281 = scmp.eq.s32.totalorder %s26, 0
      %p282 = por %p280, %p281
      %p283 = scmp.ne.s32.totalorder %s272, %s275
      %p284 = scmp.eq.s32.totalorder %s31, 1
      %p285 = por %p283, %p284
      %p286 = scmp.ne.s32.totalorder %s275, %s276
      %p287 = scmp.eq.s32.totalorder %s31, 0
      %p288 = por %p286, %p287
      %p289 = scmp.ne.s32.totalorder %s275, %s276
      %p290 = scmp.eq.s32.totalorder %s32, 1
      %p291 = por %p289, %p290
      %p293 = scmp.ne.s32.totalorder %s276, %s292
      %p294 = scmp.eq.s32.totalorder %s32, 0
      %p295 = por %p293, %p294
      %p296 = scmp.le.s32.totalorder 1, %s26
      %p297 = scmp.lt.s32.totalorder %s26, 3
      %p298 = pnand %p296, %p297
      %p299 = pneg %p298
      // Predicated region
      $region9: #{tpu_custom_call.1} parent=5 // pred_check
        _
      $region10: #{tpu_custom_call.1} parent=5 // pred_check_branch
        %301 = sbr.rel (%p298) target = $region12
      $region11: #{tpu_custom_call.1} parent=5 // pred_region
        %s302 = ssub.s32 %s26, 1
        // Predicated region
        $region13: #{tpu_custom_call.1} parent=11 // pred_check
          %p303 = pneg %p73
        $region14: #{tpu_custom_call.1} parent=11 // pred_check_branch
          %305 = sbr.rel (%p303) target = $region16
        $region15: #{tpu_custom_call.1} parent=11 // pred_region
          %s307 = ssub.s32 4096, 4096
          %308 = vsyncadd [#allocation6], %s307
          %s309 = sshll.u32 [#allocation5], 4
          %s310 = int_to_ptr.vmem [resolvable:$true] %s309
          %315 = dma.hbm_to_vmem [thread:$0]  %s1, 4096, %s310, [#allocation6], 256, 256, 16
        $region16: #{tpu_custom_call.1} parent=11 // pred_fallthru
          _
        // Predicated region
        $region17: #{tpu_custom_call.1} parent=11 // pred_check
          %p316 = pneg %p94
        $region18: #{tpu_custom_call.1} parent=11 // pred_check_branch
          %318 = sbr.rel (%p316) target = $region20
        $region19: #{tpu_custom_call.1} parent=11 // pred_region
          _
        $region20: #{tpu_custom_call.1} parent=11 // pred_fallthru
          _
        // Predicated region
        $region21: #{tpu_custom_call.1} parent=11 // pred_check
          %p319 = pneg %p115
        $region22: #{tpu_custom_call.1} parent=11 // pred_check_branch
          %321 = sbr.rel (%p319) target = $region24
        $region23: #{tpu_custom_call.1} parent=11 // pred_region
          %s323 = ssub.s32 2048, 2048
          %324 = vsyncadd [#allocation6], %s323
          %s325 = sshll.u32 [#allocation7], 4
          %s326 = int_to_ptr.vmem [resolvable:$true] %s325
          %331 = dma.hbm_to_vmem [thread:$0]  %s3, 2048, %s326, [#allocation6], 128, 128, 8
        $region24: #{tpu_custom_call.1} parent=11 // pred_fallthru
          _
        // Predicated region
        $region25: #{tpu_custom_call.1} parent=11 // pred_check
          %p332 = pneg %p136
        $region26: #{tpu_custom_call.1} parent=11 // pred_check_branch
          %334 = sbr.rel (%p332) target = $region28
        $region27: #{tpu_custom_call.1} parent=11 // pred_region
          _
        $region28: #{tpu_custom_call.1} parent=11 // pred_fallthru
          _
        // Predicated region
        $region29: #{tpu_custom_call.1} parent=11 // pred_check
          %p335 = pneg %p157
        $region30: #{tpu_custom_call.1} parent=11 // pred_check_branch
          %337 = sbr.rel (%p335) target = $region32
        $region31: #{tpu_custom_call.1} parent=11 // pred_region
          %s339 = ssub.s32 2048, 2048
          %340 = vsyncadd [#allocation9], %s339
          %s341 = sshll.u32 [#allocation8], 4
          %s342 = int_to_ptr.vmem [resolvable:$true] %s341
          %347 = dma.hbm_to_vmem [thread:$0]  %s5, 2048, %s342, [#allocation9], 128, 128, 8
        $region32: #{tpu_custom_call.1} parent=11 // pred_fallthru
          _
        // Predicated region
        $region33: #{tpu_custom_call.1} parent=11 // pred_check
          %p348 = pneg %p178
        $region34: #{tpu_custom_call.1} parent=11 // pred_check_branch
          %350 = sbr.rel (%p348) target = $region36
        $region35: #{tpu_custom_call.1} parent=11 // pred_region
          _
        $region36: #{tpu_custom_call.1} parent=11 // pred_fallthru
          _
        // Predicated region
        $region37: #{tpu_custom_call.1} parent=11 // pred_check
          %p351 = pneg %p199
        $region38: #{tpu_custom_call.1} parent=11 // pred_check_branch
          %353 = sbr.rel (%p351) target = $region40
        $region39: #{tpu_custom_call.1} parent=11 // pred_region
          %s355 = ssub.s32 2048, 2048
          %356 = vsyncadd [#allocation9], %s355
          %s357 = sshll.u32 [#allocation10], 4
          %s358 = int_to_ptr.vmem [resolvable:$true] %s357
          %363 = dma.hbm_to_vmem [thread:$0]  %s7, 2048, %s358, [#allocation9], 128, 128, 8
        $region40: #{tpu_custom_call.1} parent=11 // pred_fallthru
          _
        // Predicated region
        $region41: #{tpu_custom_call.1} parent=11 // pred_check
          %p364 = pneg %p220
        $region42: #{tpu_custom_call.1} parent=11 // pred_check_branch
          %366 = sbr.rel (%p364) target = $region44
        $region43: #{tpu_custom_call.1} parent=11 // pred_region
          _
        $region44: #{tpu_custom_call.1} parent=11 // pred_fallthru
          _
        // Predicated region
        $region45: #{tpu_custom_call.1} parent=11 // pred_check
          %p367 = pneg %p241
        $region46: #{tpu_custom_call.1} parent=11 // pred_check_branch
          %369 = sbr.rel (%p367) target = $region48
        $region47: #{tpu_custom_call.1} parent=11 // pred_region
          %s371 = ssub.s32 1024, 1024
          %372 = vsyncadd [#allocation12], %s371
          %s373 = sshll.u32 [#allocation11], 4
          %s374 = int_to_ptr.vmem [resolvable:$true] %s373
          %379 = dma.hbm_to_vmem [thread:$0]  %s9, 1024, %s374, [#allocation12], 64, 64, 4
        $region48: #{tpu_custom_call.1} parent=11 // pred_fallthru
          _
        // Predicated region
        $region49: #{tpu_custom_call.1} parent=11 // pred_check
          %p380 = pneg %p262
        $region50: #{tpu_custom_call.1} parent=11 // pred_check_branch
          %382 = sbr.rel (%p380) target = $region52
        $region51: #{tpu_custom_call.1} parent=11 // pred_region
          _
        $region52: #{tpu_custom_call.1} parent=11 // pred_fallthru
          _
      $region12: #{tpu_custom_call.1} parent=5 // pred_fallthru
        _
      %p383 = scmp.lt.s32.totalorder %s26, 2
      // Predicated region
      $region53: #{tpu_custom_call.1} parent=5 // pred_check
        %p384 = pneg %p383
      $region54: #{tpu_custom_call.1} parent=5 // pred_check_branch
        %386 = sbr.rel (%p384) target = $region56
      $region55: #{tpu_custom_call.1} parent=5 // pred_region
        // Predicated region
        $region57: #{tpu_custom_call.1} parent=55 // pred_check
          %p387 = pneg %p46
        $region58: #{tpu_custom_call.1} parent=55 // pred_check_branch
          %389 = sbr.rel (%p387) target = $region60
        $region59: #{tpu_custom_call.1} parent=55 // pred_region
          %s390 = sand.u32 %s36, 1
          %s391 = scalar_lea.sflag [#allocation3], %s390
          %s392 = sand.u32 %s36, 1
          %s393 = smul.addr %s392, 64
          %s394 = scalar_lea.vmem [#allocation2], %s393
          %s395 = smul.u32 8, %s26
          %s397 = ssub.s32 1024, 1024
          %398 = vsyncadd %s391, %s397
          %s399 = smul.addr %s395, 128
          %s400 = scalar_lea.hbm %s0, %s399
          %s401 = sshll.u32 %s394, 4
          %s402 = int_to_ptr.vmem [resolvable:$true] %s401
          %407 = dma.hbm_to_vmem [thread:$0]  %s400, 1024, %s402, %s391, 128, 128, 8
        $region60: #{tpu_custom_call.1} parent=55 // pred_fallthru
          _
      $region56: #{tpu_custom_call.1} parent=5 // pred_fallthru
        _
      %p408 = scmp.le.s32.totalorder 1, %s26
      %p409 = scmp.lt.s32.totalorder %s26, 3
      %p410 = pnand %p408, %p409
      %p411 = pneg %p410
      // Predicated region
      $region61: #{tpu_custom_call.1} parent=5 // pred_check
        _
      $region62: #{tpu_custom_call.1} parent=5 // pred_check_branch
        %413 = sbr.rel (%p410) target = $region64
      $region63: #{tpu_custom_call.1} parent=5 // pred_region
        %s414 = ssub.s32 %s26, 1
        %s415 = sand.u32 %s39, 1
        %s416 = scalar_lea.sflag [#allocation3], %s415
        %s417 = sand.u32 %s39, 1
        %s418 = smul.addr %s417, 64
        %s419 = scalar_lea.vmem [#allocation2], %s418
        // Predicated region
        $region65: #{tpu_custom_call.1} parent=63 // pred_check
          %p420 = pneg %p52
        $region66: #{tpu_custom_call.1} parent=63 // pred_check_branch
          %422 = sbr.rel (%p420) target = $region68
        $region67: #{tpu_custom_call.1} parent=63 // pred_region
          %423 = dma.done %s416, 1024
        $region68: #{tpu_custom_call.1} parent=63 // pred_fallthru
          _
        // Predicated region
        $region69: #{tpu_custom_call.1} parent=63 // pred_check
          %p424 = pneg %p73
        $region70: #{tpu_custom_call.1} parent=63 // pred_check_branch
          %426 = sbr.rel (%p424) target = $region72
        $region71: #{tpu_custom_call.1} parent=63 // pred_region
          %427 = dma.done [#allocation6], 4096
        $region72: #{tpu_custom_call.1} parent=63 // pred_fallthru
          _
        // Predicated region
        $region73: #{tpu_custom_call.1} parent=63 // pred_check
          %p428 = pneg %p115
        $region74: #{tpu_custom_call.1} parent=63 // pred_check_branch
          %430 = sbr.rel (%p428) target = $region76
        $region75: #{tpu_custom_call.1} parent=63 // pred_region
          %431 = dma.done [#allocation6], 2048
        $region76: #{tpu_custom_call.1} parent=63 // pred_fallthru
          _
        // Predicated region
        $region77: #{tpu_custom_call.1} parent=63 // pred_check
          %p432 = pneg %p157
        $region78: #{tpu_custom_call.1} parent=63 // pred_check_branch
          %434 = sbr.rel (%p432) target = $region80
        $region79: #{tpu_custom_call.1} parent=63 // pred_region
          %435 = dma.done [#allocation9], 2048
        $region80: #{tpu_custom_call.1} parent=63 // pred_fallthru
          _
        // Predicated region
        $region81: #{tpu_custom_call.1} parent=63 // pred_check
          %p436 = pneg %p199
        $region82: #{tpu_custom_call.1} parent=63 // pred_check_branch
          %438 = sbr.rel (%p436) target = $region84
        $region83: #{tpu_custom_call.1} parent=63 // pred_region
          %439 = dma.done [#allocation9], 2048
        $region84: #{tpu_custom_call.1} parent=63 // pred_fallthru
          _
        // Predicated region
        $region85: #{tpu_custom_call.1} parent=63 // pred_check
          %p440 = pneg %p241
        $region86: #{tpu_custom_call.1} parent=63 // pred_check_branch
          %442 = sbr.rel (%p440) target = $region88
        $region87: #{tpu_custom_call.1} parent=63 // pred_region
          %443 = dma.done [#allocation12], 1024
        $region88: #{tpu_custom_call.1} parent=63 // pred_fallthru
          _
        %s444 = sand.u32 %s39, 1
        %s445 = scalar_lea.sflag [#allocation3], %s444
        %s446 = sand.u32 %s39, 1
        %s447 = smul.addr %s446, 64
        %s448 = scalar_lea.vmem [#allocation2], %s447
        %p449 = pneg %p52
        %p450 = pneg %p49
        %p451 = pneg %p73
        %p452 = pneg %p70
        %p453 = pneg %p94
        %p454 = pneg %p91
        %p455 = pneg %p115
        %p456 = pneg %p112
        %p457 = pneg %p136
        %p458 = pneg %p133
        %p459 = pneg %p157
        %p460 = pneg %p154
        %p461 = pneg %p178
        %p462 = pneg %p175
        %p463 = pneg %p199
        %p464 = pneg %p196
        %p465 = pneg %p220
        %p466 = pneg %p217
        %p467 = pneg %p241
        %p468 = pneg %p238
        %p469 = pneg %p262
        %p470 = pneg %p259
        %p471 = pneg %p288
        %p472 = pneg %p285
        %s473 = sand.u32 %s275, 1
        %s474 = scalar_lea.sflag [#allocation4], %s473
        %s475 = sand.u32 %s275, 1
        %s476 = smul.addr %s475, 64
        %s477 = scalar_lea.vmem [#allocation13], %s476
        %s478 = smul.u32 8, %s31
        %s479 = smul.u32 8, %s31
        %v481 = vld [vmem:[%s419] sm:$0xff]
        %v482 = vld [vmem:[%s419 + $0x8] sm:$0xff]
        %v483 = vld [vmem:[%s419 + $0x10] sm:$0xff]
        %v484 = vld [vmem:[%s419 + $0x18] sm:$0xff]
        %v485 = vld [vmem:[%s419 + $0x20] sm:$0xff]
        %v486 = vld [vmem:[%s419 + $0x28] sm:$0xff]
        %v487 = vld [vmem:[%s419 + $0x30] sm:$0xff]
        %v488 = vld [vmem:[%s419 + $0x38] sm:$0xff]
        %v489 = vpack.c.bf16 %v482, %v481
        %v490 = vpack.c.bf16 %v484, %v483
        %v491 = vpack.c.bf16 %v486, %v485
        %v492 = vpack.c.bf16 %v488, %v487
        %v493 = vld [vmem:[#allocation5] sm:$0xff]
        %v494 = vld [vmem:[#allocation5 + $0x8] sm:$0xff]
        %v495 = vld [vmem:[#allocation5 + $0x10] sm:$0xff]
        %v496 = vld [vmem:[#allocation5 + $0x18] sm:$0xff]
        %v497 = vld [vmem:[#allocation5 + $0x20] sm:$0xff]
        %v498 = vld [vmem:[#allocation5 + $0x28] sm:$0xff]
        %v499 = vld [vmem:[#allocation5 + $0x30] sm:$0xff]
        %v500 = vld [vmem:[#allocation5 + $0x38] sm:$0xff]
        %v501 = vld [vmem:[#allocation5 + $0x40] sm:$0xff]
        %v502 = vld [vmem:[#allocation5 + $0x48] sm:$0xff]
        %v503 = vld [vmem:[#allocation5 + $0x50] sm:$0xff]
        %v504 = vld [vmem:[#allocation5 + $0x58] sm:$0xff]
        %v505 = vld [vmem:[#allocation5 + $0x60] sm:$0xff]
        %v506 = vld [vmem:[#allocation5 + $0x68] sm:$0xff]
        %v507 = vld [vmem:[#allocation5 + $0x70] sm:$0xff]
        %v508 = vld [vmem:[#allocation5 + $0x78] sm:$0xff]
        %v509 = vld [vmem:[#allocation5 + $0x80] sm:$0xff]
        %v510 = vld [vmem:[#allocation5 + $0x88] sm:$0xff]
        %v511 = vld [vmem:[#allocation5 + $0x90] sm:$0xff]
        %v512 = vld [vmem:[#allocation5 + $0x98] sm:$0xff]
        %v513 = vld [vmem:[#allocation5 + $0xa0] sm:$0xff]
        %v514 = vld [vmem:[#allocation5 + $0xa8] sm:$0xff]
        %v515 = vld [vmem:[#allocation5 + $0xb0] sm:$0xff]
        %v516 = vld [vmem:[#allocation5 + $0xb8] sm:$0xff]
        %v517 = vld [vmem:[#allocation5 + $0xc0] sm:$0xff]
        %v518 = vld [vmem:[#allocation5 + $0xc8] sm:$0xff]
        %v519 = vld [vmem:[#allocation5 + $0xd0] sm:$0xff]
        %v520 = vld [vmem:[#allocation5 + $0xd8] sm:$0xff]
        %v521 = vld [vmem:[#allocation5 + $0xe0] sm:$0xff]
        %v522 = vld [vmem:[#allocation5 + $0xe8] sm:$0xff]
        %v523 = vld [vmem:[#allocation5 + $0xf0] sm:$0xff]
        %v524 = vld [vmem:[#allocation5 + $0xf8] sm:$0xff]
        %v557 = vunpack.c.l.b16 %v493
        %v558 = vunpack.c.h.b16 %v493
        %v559 = vunpack.c.l.b16 %v494
        %v560 = vunpack.c.h.b16 %v494
        %v561 = vunpack.c.l.b16 %v495
        %v562 = vunpack.c.h.b16 %v495
        %v563 = vunpack.c.l.b16 %v496
        %v564 = vunpack.c.h.b16 %v496
        %v565 = vunpack.c.l.b16 %v497
        %v566 = vunpack.c.h.b16 %v497
        %v567 = vunpack.c.l.b16 %v498
        %v568 = vunpack.c.h.b16 %v498
        %v569 = vunpack.c.l.b16 %v499
        %v570 = vunpack.c.h.b16 %v499
        %v571 = vunpack.c.l.b16 %v500
        %v572 = vunpack.c.h.b16 %v500
        %v573 = vunpack.c.l.b16 %v501
        %v574 = vunpack.c.h.b16 %v501
        %v575 = vunpack.c.l.b16 %v502
        %v576 = vunpack.c.h.b16 %v502
        %v577 = vunpack.c.l.b16 %v503
        %v578 = vunpack.c.h.b16 %v503
        %v579 = vunpack.c.l.b16 %v504
        %v580 = vunpack.c.h.b16 %v504
        %v581 = vunpack.c.l.b16 %v505
        %v582 = vunpack.c.h.b16 %v505
        %v583 = vunpack.c.l.b16 %v506
        %v584 = vunpack.c.h.b16 %v506
        %v585 = vunpack.c.l.b16 %v507
        %v586 = vunpack.c.h.b16 %v507
        %v587 = vunpack.c.l.b16 %v508
        %v588 = vunpack.c.h.b16 %v508
        %v589 = vunpack.c.l.b16 %v509
        %v590 = vunpack.c.h.b16 %v509
        %v591 = vunpack.c.l.b16 %v510
        %v592 = vunpack.c.h.b16 %v510
        %v593 = vunpack.c.l.b16 %v511
        %v594 = vunpack.c.h.b16 %v511
        %v595 = vunpack.c.l.b16 %v512
        %v596 = vunpack.c.h.b16 %v512
        %v597 = vunpack.c.l.b16 %v513
        %v598 = vunpack.c.h.b16 %v513
        %v599 = vunpack.c.l.b16 %v514
        %v600 = vunpack.c.h.b16 %v514
        %v601 = vunpack.c.l.b16 %v515
        %v602 = vunpack.c.h.b16 %v515
        %v603 = vunpack.c.l.b16 %v516
        %v604 = vunpack.c.h.b16 %v516
        %v605 = vunpack.c.l.b16 %v517
        %v606 = vunpack.c.h.b16 %v517
        %v607 = vunpack.c.l.b16 %v518
        %v608 = vunpack.c.h.b16 %v518
        %v609 = vunpack.c.l.b16 %v519
        %v610 = vunpack.c.h.b16 %v519
        %v611 = vunpack.c.l.b16 %v520
        %v612 = vunpack.c.h.b16 %v520
        %v613 = vunpack.c.l.b16 %v521
        %v614 = vunpack.c.h.b16 %v521
        %v615 = vunpack.c.l.b16 %v522
        %v616 = vunpack.c.h.b16 %v522
        %v617 = vunpack.c.l.b16 %v523
        %v618 = vunpack.c.h.b16 %v523
        %v619 = vunpack.c.l.b16 %v524
        %v620 = vunpack.c.h.b16 %v524
        %v621 = vpack.c.b16 %v561, %v557
        %v622 = vpack.c.b16 %v562, %v558
        %v623 = vpack.c.b16 %v563, %v559
        %v624 = vpack.c.b16 %v564, %v560
        %v625 = vpack.c.b16 %v569, %v565
        %v626 = vpack.c.b16 %v570, %v566
        %v627 = vpack.c.b16 %v571, %v567
        %v628 = vpack.c.b16 %v572, %v568
        %v629 = vpack.c.b16 %v577, %v573
        %v630 = vpack.c.b16 %v578, %v574
        %v631 = vpack.c.b16 %v579, %v575
        %v632 = vpack.c.b16 %v580, %v576
        %v633 = vpack.c.b16 %v585, %v581
        %v634 = vpack.c.b16 %v586, %v582
        %v635 = vpack.c.b16 %v587, %v583
        %v636 = vpack.c.b16 %v588, %v584
        %v637 = vpack.c.b16 %v593, %v589
        %v638 = vpack.c.b16 %v594, %v590
        %v639 = vpack.c.b16 %v595, %v591
        %v640 = vpack.c.b16 %v596, %v592
        %v641 = vpack.c.b16 %v601, %v597
        %v642 = vpack.c.b16 %v602, %v598
        %v643 = vpack.c.b16 %v603, %v599
        %v644 = vpack.c.b16 %v604, %v600
        %v645 = vpack.c.b16 %v609, %v605
        %v646 = vpack.c.b16 %v610, %v606
        %v647 = vpack.c.b16 %v611, %v607
        %v648 = vpack.c.b16 %v612, %v608
        %v649 = vpack.c.b16 %v617, %v613
        %v650 = vpack.c.b16 %v618, %v614
        %v651 = vpack.c.b16 %v619, %v615
        %v652 = vpack.c.b16 %v620, %v616
        %685 = vmatprep.subr.bf16.mxu0 %v622
        %686 = vmatpush1.bf16.msra.mxu0 %v621
        %687 = vmatprep.subr.bf16.mxu0 %v626
        %688 = vmatpush1.bf16.msra.mxu0 %v625
        %689 = vmatprep.subr.bf16.mxu0 %v630
        %690 = vmatpush1.bf16.msra.mxu0 %v629
        %691 = vmatprep.subr.bf16.mxu0 %v634
        %692 = vmatpush1.bf16.msra.mxu0 %v633
        %693 = vmatprep.subr.bf16.mxu0 %v638
        %694 = vmatpush1.bf16.msra.mxu0 %v637
        %695 = vmatprep.subr.bf16.mxu0 %v642
        %696 = vmatpush1.bf16.msra.mxu0 %v641
        %697 = vmatprep.subr.bf16.mxu0 %v646
        %698 = vmatpush1.bf16.msra.mxu0 %v645
        %699 = vmatprep.subr.bf16.mxu0 %v650
        %700 = vmatpush1.bf16.msra.mxu0 %v649
        %701 = vmatprep.subr.bf16.mxu0 0
        %702 = vmatpush1.bf16.msra.mxu0 0
        %703 = vmatprep.subr.bf16.mxu0 0
        %704 = vmatpush1.bf16.msra.mxu0 0
        %705 = vmatprep.subr.bf16.mxu0 0
        %706 = vmatpush1.bf16.msra.mxu0 0
        %707 = vmatprep.subr.bf16.mxu0 0
        %708 = vmatpush1.bf16.msra.mxu0 0
        %709 = vmatprep.subr.bf16.mxu0 0
        %710 = vmatpush1.bf16.msra.mxu0 0
        %711 = vmatprep.subr.bf16.mxu0 0
        %712 = vmatpush1.bf16.msra.mxu0 0
        %713 = vmatprep.subr.bf16.mxu0 0
        %714 = vmatpush1.bf16.msra.mxu0 0
        %715 = vmatprep.subr.bf16.mxu0 0
        %716 = vmatpush1.bf16.msra.mxu0 0
        %717 = vmatprep.mubr.bf16.mxu0 0
        %718 = vmatmul.mubr.bf16.gmra.mrb[0].mxu0 %v489
        %v719 = vpop.f32.mrb[0].mxu0
        %v720 = vadd.f32 0.0, %v719
        %v721 = vpop.f32.mrb[0].mxu0
        %v722 = vadd.f32 0.0, %v721
        %v723 = vpop.f32.mrb[0].mxu0
        %v724 = vadd.f32 0.0, %v723
        %v725 = vpop.f32.mrb[0].mxu0
        %v726 = vadd.f32 0.0, %v725
        %727 = vmatprep.mubr.bf16.mxu0 0
        %728 = vmatmul.mubr.bf16.gmra.mrb[0].mxu0 %v490
        %v729 = vpop.f32.mrb[0].mxu0
        %v730 = vadd.f32 0.0, %v729
        %v731 = vpop.f32.mrb[0].mxu0
        %v732 = vadd.f32 0.0, %v731
        %v733 = vpop.f32.mrb[0].mxu0
        %v734 = vadd.f32 0.0, %v733
        %v735 = vpop.f32.mrb[0].mxu0
        %v736 = vadd.f32 0.0, %v735
        %737 = vmatprep.mubr.bf16.mxu0 0
        %738 = vmatmul.mubr.bf16.gmra.mrb[0].mxu0 %v491
        %v739 = vpop.f32.mrb[0].mxu0
        %v740 = vadd.f32 0.0, %v739
        %v741 = vpop.f32.mrb[0].mxu0
        %v742 = vadd.f32 0.0, %v741
        %v743 = vpop.f32.mrb[0].mxu0
        %v744 = vadd.f32 0.0, %v743
        %v745 = vpop.f32.mrb[0].mxu0
        %v746 = vadd.f32 0.0, %v745
        %747 = vmatprep.mubr.bf16.mxu0 0
        %748 = vmatmul.mubr.bf16.gmra.mrb[0].mxu0 %v492
        %v749 = vpop.f32.mrb[0].mxu0
        %v750 = vadd.f32 0.0, %v749
        %v751 = vpop.f32.mrb[0].mxu0
        %v752 = vadd.f32 0.0, %v751
        %v753 = vpop.f32.mrb[0].mxu0
        %v754 = vadd.f32 0.0, %v753
        %v755 = vpop.f32.mrb[0].mxu0
        %v756 = vadd.f32 0.0, %v755
        %757 = vdwg.mxu0
        %758 = vmatprep.subr.bf16.mxu0 %v624
        %759 = vmatpush1.bf16.msra.mxu0 %v623
        %760 = vmatprep.subr.bf16.mxu0 %v628
        %761 = vmatpush1.bf16.msra.mxu0 %v627
        %762 = vmatprep.subr.bf16.mxu0 %v632
        %763 = vmatpush1.bf16.msra.mxu0 %v631
        %764 = vmatprep.subr.bf16.mxu0 %v636
        %765 = vmatpush1.bf16.msra.mxu0 %v635
        %766 = vmatprep.subr.bf16.mxu0 %v640
        %767 = vmatpush1.bf16.msra.mxu0 %v639
        %768 = vmatprep.subr.bf16.mxu0 %v644
        %769 = vmatpush1.bf16.msra.mxu0 %v643
        %770 = vmatprep.subr.bf16.mxu0 %v648
        %771 = vmatpush1.bf16.msra.mxu0 %v647
        %772 = vmatprep.subr.bf16.mxu0 %v652
        %773 = vmatpush1.bf16.msra.mxu0 %v651
        %774 = vmatprep.subr.bf16.mxu0 0
        %775 = vmatpush1.bf16.msra.mxu0 0
        %776 = vmatprep.subr.bf16.mxu0 0
        %777 = vmatpush1.bf16.msra.mxu0 0
        %778 = vmatprep.subr.bf16.mxu0 0
        %779 = vmatpush1.bf16.msra.mxu0 0
        %780 = vmatprep.subr.bf16.mxu0 0
        %781 = vmatpush1.bf16.msra.mxu0 0
        %782 = vmatprep.subr.bf16.mxu0 0
        %783 = vmatpush1.bf16.msra.mxu0 0
        %784 = vmatprep.subr.bf16.mxu0 0
        %785 = vmatpush1.bf16.msra.mxu0 0
        %786 = vmatprep.subr.bf16.mxu0 0
        %787 = vmatpush1.bf16.msra.mxu0 0
        %788 = vmatprep.subr.bf16.mxu0 0
        %789 = vmatpush1.bf16.msra.mxu0 0
        %790 = vmatprep.mubr.bf16.mxu0 0
        %791 = vmatmul.mubr.bf16.gmra.mrb[0].mxu0 %v489
        %v792 = vpop.f32.mrb[0].mxu0
        %v793 = vadd.f32 0.0, %v792
        %v794 = vpop.f32.mrb[0].mxu0
        %v795 = vadd.f32 0.0, %v794
        %v796 = vpop.f32.mrb[0].mxu0
        %v797 = vadd.f32 0.0, %v796
        %v798 = vpop.f32.mrb[0].mxu0
        %v799 = vadd.f32 0.0, %v798
        %800 = vmatprep.mubr.bf16.mxu0 0
        %801 = vmatmul.mubr.bf16.gmra.mrb[0].mxu0 %v490
        %v802 = vpop.f32.mrb[0].mxu0
        %v803 = vadd.f32 0.0, %v802
        %v804 = vpop.f32.mrb[0].mxu0
        %v805 = vadd.f32 0.0, %v804
        %v806 = vpop.f32.mrb[0].mxu0
        %v807 = vadd.f32 0.0, %v806
        %v808 = vpop.f32.mrb[0].mxu0
        %v809 = vadd.f32 0.0, %v808
        %810 = vmatprep.mubr.bf16.mxu0 0
        %811 = vmatmul.mubr.bf16.gmra.mrb[0].mxu0 %v491
        %v812 = vpop.f32.mrb[0].mxu0
        %v813 = vadd.f32 0.0, %v812
        %v814 = vpop.f32.mrb[0].mxu0
        %v815 = vadd.f32 0.0, %v814
        %v816 = vpop.f32.mrb[0].mxu0
        %v817 = vadd.f32 0.0, %v816
        %v818 = vpop.f32.mrb[0].mxu0
        %v819 = vadd.f32 0.0, %v818
        %820 = vmatprep.mubr.bf16.mxu0 0
        %821 = vmatmul.mubr.bf16.gmra.mrb[0].mxu0 %v492
        %v822 = vpop.f32.mrb[0].mxu0
        %v823 = vadd.f32 0.0, %v822
        %v824 = vpop.f32.mrb[0].mxu0
        %v825 = vadd.f32 0.0, %v824
        %v826 = vpop.f32.mrb[0].mxu0
        %v827 = vadd.f32 0.0, %v826
        %v828 = vpop.f32.mrb[0].mxu0
        %v829 = vadd.f32 0.0, %v828
        %830 = vdwg.mxu0
        %v831 = vld [vmem:[%s2] sm:$0x1]
        %v833 = vlaneseq
        %v834 = vshrl.u32 %v833, 7
        %v835 = vsub.s32 0, %v834
        %v836 = vrot.slane %v831, %v835
        %v838 = vadd.f32 %v720, %v836
        %v839 = vadd.f32 %v724, %v836
        %v840 = vadd.f32 %v730, %v836
        %v841 = vadd.f32 %v734, %v836
        %v842 = vadd.f32 %v740, %v836
        %v843 = vadd.f32 %v744, %v836
        %v844 = vadd.f32 %v750, %v836
        %v845 = vadd.f32 %v754, %v836
        %v846 = vpack.c.bf16 %v839, %v838
        %v847 = vpack.c.bf16 %v841, %v840
        %v848 = vpack.c.bf16 %v843, %v842
        %v849 = vpack.c.bf16 %v845, %v844
        %v850 = vld [vmem:[#allocation7] sm:$0xff]
        %v851 = vld [vmem:[#allocation7 + $0x8] sm:$0xff]
        %v852 = vld [vmem:[#allocation7 + $0x10] sm:$0xff]
        %v853 = vld [vmem:[#allocation7 + $0x18] sm:$0xff]
        %v854 = vld [vmem:[#allocation7 + $0x20] sm:$0xff]
        %v855 = vld [vmem:[#allocation7 + $0x28] sm:$0xff]
        %v856 = vld [vmem:[#allocation7 + $0x30] sm:$0xff]
        %v857 = vld [vmem:[#allocation7 + $0x38] sm:$0xff]
        %v858 = vld [vmem:[#allocation7 + $0x40] sm:$0xff]
        %v859 = vld [vmem:[#allocation7 + $0x48] sm:$0xff]
        %v860 = vld [vmem:[#allocation7 + $0x50] sm:$0xff]
        %v861 = vld [vmem:[#allocation7 + $0x58] sm:$0xff]
        %v862 = vld [vmem:[#allocation7 + $0x60] sm:$0xff]
        %v863 = vld [vmem:[#allocation7 + $0x68] sm:$0xff]
        %v864 = vld [vmem:[#allocation7 + $0x70] sm:$0xff]
        %v865 = vld [vmem:[#allocation7 + $0x78] sm:$0xff]
        %v882 = vunpack.c.l.b16 %v850
        %v883 = vunpack.c.h.b16 %v850
        %v884 = vunpack.c.l.b16 %v851
        %v885 = vunpack.c.h.b16 %v851
        %v886 = vunpack.c.l.b16 %v852
        %v887 = vunpack.c.h.b16 %v852
        %v888 = vunpack.c.l.b16 %v853
        %v889 = vunpack.c.h.b16 %v853
        %v890 = vunpack.c.l.b16 %v854
        %v891 = vunpack.c.h.b16 %v854
        %v892 = vunpack.c.l.b16 %v855
        %v893 = vunpack.c.h.b16 %v855
        %v894 = vunpack.c.l.b16 %v856
        %v895 = vunpack.c.h.b16 %v856
        %v896 = vunpack.c.l.b16 %v857
        %v897 = vunpack.c.h.b16 %v857
        %v898 = vunpack.c.l.b16 %v858
        %v899 = vunpack.c.h.b16 %v858
        %v900 = vunpack.c.l.b16 %v859
        %v901 = vunpack.c.h.b16 %v859
        %v902 = vunpack.c.l.b16 %v860
        %v903 = vunpack.c.h.b16 %v860
        %v904 = vunpack.c.l.b16 %v861
        %v905 = vunpack.c.h.b16 %v861
        %v906 = vunpack.c.l.b16 %v862
        %v907 = vunpack.c.h.b16 %v862
        %v908 = vunpack.c.l.b16 %v863
        %v909 = vunpack.c.h.b16 %v863
        %v910 = vunpack.c.l.b16 %v864
        %v911 = vunpack.c.h.b16 %v864
        %v912 = vunpack.c.l.b16 %v865
        %v913 = vunpack.c.h.b16 %v865
        %v914 = vpack.c.b16 %v884, %v882
        %v915 = vpack.c.b16 %v885, %v883
        %v916 = vpack.c.b16 %v888, %v886
        %v917 = vpack.c.b16 %v889, %v887
        %v918 = vpack.c.b16 %v892, %v890
        %v919 = vpack.c.b16 %v893, %v891
        %v920 = vpack.c.b16 %v896, %v894
        %v921 = vpack.c.b16 %v897, %v895
        %v922 = vpack.c.b16 %v900, %v898
        %v923 = vpack.c.b16 %v901, %v899
        %v924 = vpack.c.b16 %v904, %v902
        %v925 = vpack.c.b16 %v905, %v903
        %v926 = vpack.c.b16 %v908, %v906
        %v927 = vpack.c.b16 %v909, %v907
        %v928 = vpack.c.b16 %v912, %v910
        %v929 = vpack.c.b16 %v913, %v911
        %946 = vmatprep.subr.bf16.mxu0 %v915
        %947 = vmatpush1.bf16.msra.mxu0 %v914
        %948 = vmatprep.subr.bf16.mxu0 %v917
        %949 = vmatpush1.bf16.msra.mxu0 %v916
        %950 = vmatprep.subr.bf16.mxu0 %v919
        %951 = vmatpush1.bf16.msra.mxu0 %v918
        %952 = vmatprep.subr.bf16.mxu0 %v921
        %953 = vmatpush1.bf16.msra.mxu0 %v920
        %954 = vmatprep.subr.bf16.mxu0 %v923
        %955 = vmatpush1.bf16.msra.mxu0 %v922
        %956 = vmatprep.subr.bf16.mxu0 %v925
        %957 = vmatpush1.bf16.msra.mxu0 %v924
        %958 = vmatprep.subr.bf16.mxu0 %v927
        %959 = vmatpush1.bf16.msra.mxu0 %v926
        %960 = vmatprep.subr.bf16.mxu0 %v929
        %961 = vmatpush1.bf16.msra.mxu0 %v928
        %962 = vmatprep.subr.bf16.mxu0 0
        %963 = vmatpush1.bf16.msra.mxu0 0
        %964 = vmatprep.subr.bf16.mxu0 0
        %965 = vmatpush1.bf16.msra.mxu0 0
        %966 = vmatprep.subr.bf16.mxu0 0
        %967 = vmatpush1.bf16.msra.mxu0 0
        %968 = vmatprep.subr.bf16.mxu0 0
        %969 = vmatpush1.bf16.msra.mxu0 0
        %970 = vmatprep.subr.bf16.mxu0 0
        %971 = vmatpush1.bf16.msra.mxu0 0
        %972 = vmatprep.subr.bf16.mxu0 0
        %973 = vmatpush1.bf16.msra.mxu0 0
        %974 = vmatprep.subr.bf16.mxu0 0
        %975 = vmatpush1.bf16.msra.mxu0 0
        %976 = vmatprep.subr.bf16.mxu0 0
        %977 = vmatpush1.bf16.msra.mxu0 0
        %978 = vmatprep.mubr.bf16.mxu0 0
        %979 = vmatmul.mubr.bf16.gmra.mrb[0].mxu0 %v846
        %v980 = vpop.f32.mrb[0].mxu0
        %v981 = vadd.f32 0.0, %v980
        %v982 = vpop.f32.mrb[0].mxu0
        %v983 = vadd.f32 0.0, %v982
        %v984 = vpop.f32.mrb[0].mxu0
        %v985 = vadd.f32 0.0, %v984
        %v986 = vpop.f32.mrb[0].mxu0
        %v987 = vadd.f32 0.0, %v986
        %988 = vmatprep.mubr.bf16.mxu0 0
        %989 = vmatmul.mubr.bf16.gmra.mrb[0].mxu0 %v847
        %v990 = vpop.f32.mrb[0].mxu0
        %v991 = vadd.f32 0.0, %v990
        %v992 = vpop.f32.mrb[0].mxu0
        %v993 = vadd.f32 0.0, %v992
        %v994 = vpop.f32.mrb[0].mxu0
        %v995 = vadd.f32 0.0, %v994
        %v996 = vpop.f32.mrb[0].mxu0
        %v997 = vadd.f32 0.0, %v996
        %998 = vmatprep.mubr.bf16.mxu0 0
        %999 = vmatmul.mubr.bf16.gmra.mrb[0].mxu0 %v848
        %v1000 = vpop.f32.mrb[0].mxu0
        %v1001 = vadd.f32 0.0, %v1000
        %v1002 = vpop.f32.mrb[0].mxu0
        %v1003 = vadd.f32 0.0, %v1002
        %v1004 = vpop.f32.mrb[0].mxu0
        %v1005 = vadd.f32 0.0, %v1004
        %v1006 = vpop.f32.mrb[0].mxu0
        %v1007 = vadd.f32 0.0, %v1006
        %1008 = vmatprep.mubr.bf16.mxu0 0
        %1009 = vmatmul.mubr.bf16.gmra.mrb[0].mxu0 %v849
        %v1010 = vpop.f32.mrb[0].mxu0
        %v1011 = vadd.f32 0.0, %v1010
        %v1012 = vpop.f32.mrb[0].mxu0
        %v1013 = vadd.f32 0.0, %v1012
        %v1014 = vpop.f32.mrb[0].mxu0
        %v1015 = vadd.f32 0.0, %v1014
        %v1016 = vpop.f32.mrb[0].mxu0
        %v1017 = vadd.f32 0.0, %v1016
        %1018 = vdwg.mxu0
        %v1019 = vadd.f32 %v722, %v981
        %v1020 = vadd.f32 %v726, %v985
        %v1021 = vadd.f32 %v732, %v991
        %v1022 = vadd.f32 %v736, %v995
        %v1023 = vadd.f32 %v742, %v1001
        %v1024 = vadd.f32 %v746, %v1005
        %v1025 = vadd.f32 %v752, %v1011
        %v1026 = vadd.f32 %v756, %v1015
        %v1027 = vld [vmem:[%s4] sm:$0x1]
        %v1029 = vlaneseq
        %v1030 = vshrl.u32 %v1029, 7
        %v1031 = vsub.s32 0, %v1030
        %v1032 = vrot.slane %v1027, %v1031
        %v1034 = vadd.f32 %v1019, %v1032
        %v1035 = vadd.f32 %v1020, %v1032
        %v1036 = vadd.f32 %v1021, %v1032
        %v1037 = vadd.f32 %v1022, %v1032
        %v1038 = vadd.f32 %v1023, %v1032
        %v1039 = vadd.f32 %v1024, %v1032
        %v1040 = vadd.f32 %v1025, %v1032
        %v1041 = vadd.f32 %v1026, %v1032
        %v1042 = vld [vmem:[%s10] sm:$0x1]
        %v1044 = vlaneseq
        %v1045 = vshrl.u32 %v1044, 7
        %v1046 = vsub.s32 0, %v1045
        %v1047 = vrot.slane %v1042, %v1046
        %v1049 = vadd.f32 %v983, %v1047
        %v1050 = vadd.f32 %v987, %v1047
        %v1051 = vadd.f32 %v993, %v1047
        %v1052 = vadd.f32 %v997, %v1047
        %v1053 = vadd.f32 %v1003, %v1047
        %v1054 = vadd.f32 %v1007, %v1047
        %v1055 = vadd.f32 %v1013, %v1047
        %v1056 = vadd.f32 %v1017, %v1047
        %v1057 = vpack.c.bf16 %v1035, %v1034
        %v1058 = vpack.c.bf16 %v1037, %v1036
        %v1059 = vpack.c.bf16 %v1039, %v1038
        %v1060 = vpack.c.bf16 %v1041, %v1040
        %v1061 = vld [vmem:[#allocation8] sm:$0xff]
        %v1062 = vld [vmem:[#allocation8 + $0x8] sm:$0xff]
        %v1063 = vld [vmem:[#allocation8 + $0x10] sm:$0xff]
        %v1064 = vld [vmem:[#allocation8 + $0x18] sm:$0xff]
        %v1065 = vld [vmem:[#allocation8 + $0x20] sm:$0xff]
        %v1066 = vld [vmem:[#allocation8 + $0x28] sm:$0xff]
        %v1067 = vld [vmem:[#allocation8 + $0x30] sm:$0xff]
        %v1068 = vld [vmem:[#allocation8 + $0x38] sm:$0xff]
        %v1069 = vld [vmem:[#allocation8 + $0x40] sm:$0xff]
        %v1070 = vld [vmem:[#allocation8 + $0x48] sm:$0xff]
        %v1071 = vld [vmem:[#allocation8 + $0x50] sm:$0xff]
        %v1072 = vld [vmem:[#allocation8 + $0x58] sm:$0xff]
        %v1073 = vld [vmem:[#allocation8 + $0x60] sm:$0xff]
        %v1074 = vld [vmem:[#allocation8 + $0x68] sm:$0xff]
        %v1075 = vld [vmem:[#allocation8 + $0x70] sm:$0xff]
        %v1076 = vld [vmem:[#allocation8 + $0x78] sm:$0xff]
        %v1093 = vunpack.c.l.b16 %v1061
        %v1094 = vunpack.c.h.b16 %v1061
        %v1095 = vunpack.c.l.b16 %v1062
        %v1096 = vunpack.c.h.b16 %v1062
        %v1097 = vunpack.c.l.b16 %v1063
        %v1098 = vunpack.c.h.b16 %v1063
        %v1099 = vunpack.c.l.b16 %v1064
        %v1100 = vunpack.c.h.b16 %v1064
        %v1101 = vunpack.c.l.b16 %v1065
        %v1102 = vunpack.c.h.b16 %v1065
        %v1103 = vunpack.c.l.b16 %v1066
        %v1104 = vunpack.c.h.b16 %v1066
        %v1105 = vunpack.c.l.b16 %v1067
        %v1106 = vunpack.c.h.b16 %v1067
        %v1107 = vunpack.c.l.b16 %v1068
        %v1108 = vunpack.c.h.b16 %v1068
        %v1109 = vunpack.c.l.b16 %v1069
        %v1110 = vunpack.c.h.b16 %v1069
        %v1111 = vunpack.c.l.b16 %v1070
        %v1112 = vunpack.c.h.b16 %v1070
        %v1113 = vunpack.c.l.b16 %v1071
        %v1114 = vunpack.c.h.b16 %v1071
        %v1115 = vunpack.c.l.b16 %v1072
        %v1116 = vunpack.c.h.b16 %v1072
        %v1117 = vunpack.c.l.b16 %v1073
        %v1118 = vunpack.c.h.b16 %v1073
        %v1119 = vunpack.c.l.b16 %v1074
        %v1120 = vunpack.c.h.b16 %v1074
        %v1121 = vunpack.c.l.b16 %v1075
        %v1122 = vunpack.c.h.b16 %v1075
        %v1123 = vunpack.c.l.b16 %v1076
        %v1124 = vunpack.c.h.b16 %v1076
        %v1125 = vpack.c.b16 %v1095, %v1093
        %v1126 = vpack.c.b16 %v1096, %v1094
        %v1127 = vpack.c.b16 %v1099, %v1097
        %v1128 = vpack.c.b16 %v1100, %v1098
        %v1129 = vpack.c.b16 %v1103, %v1101
        %v1130 = vpack.c.b16 %v1104, %v1102
        %v1131 = vpack.c.b16 %v1107, %v1105
        %v1132 = vpack.c.b16 %v1108, %v1106
        %v1133 = vpack.c.b16 %v1111, %v1109
        %v1134 = vpack.c.b16 %v1112, %v1110
        %v1135 = vpack.c.b16 %v1115, %v1113
        %v1136 = vpack.c.b16 %v1116, %v1114
        %v1137 = vpack.c.b16 %v1119, %v1117
        %v1138 = vpack.c.b16 %v1120, %v1118
        %v1139 = vpack.c.b16 %v1123, %v1121
        %v1140 = vpack.c.b16 %v1124, %v1122
        %1157 = vmatprep.subr.bf16.mxu0 %v1126
        %1158 = vmatpush1.bf16.msra.mxu0 %v1125
        %1159 = vmatprep.subr.bf16.mxu0 %v1128
        %1160 = vmatpush1.bf16.msra.mxu0 %v1127
        %1161 = vmatprep.subr.bf16.mxu0 %v1130
        %1162 = vmatpush1.bf16.msra.mxu0 %v1129
        %1163 = vmatprep.subr.bf16.mxu0 %v1132
        %1164 = vmatpush1.bf16.msra.mxu0 %v1131
        %1165 = vmatprep.subr.bf16.mxu0 %v1134
        %1166 = vmatpush1.bf16.msra.mxu0 %v1133
        %1167 = vmatprep.subr.bf16.mxu0 %v1136
        %1168 = vmatpush1.bf16.msra.mxu0 %v1135
        %1169 = vmatprep.subr.bf16.mxu0 %v1138
        %1170 = vmatpush1.bf16.msra.mxu0 %v1137
        %1171 = vmatprep.subr.bf16.mxu0 %v1140
        %1172 = vmatpush1.bf16.msra.mxu0 %v1139
        %1173 = vmatprep.subr.bf16.mxu0 0
        %1174 = vmatpush1.bf16.msra.mxu0 0
        %1175 = vmatprep.subr.bf16.mxu0 0
        %1176 = vmatpush1.bf16.msra.mxu0 0
        %1177 = vmatprep.subr.bf16.mxu0 0
        %1178 = vmatpush1.bf16.msra.mxu0 0
        %1179 = vmatprep.subr.bf16.mxu0 0
        %1180 = vmatpush1.bf16.msra.mxu0 0
        %1181 = vmatprep.subr.bf16.mxu0 0
        %1182 = vmatpush1.bf16.msra.mxu0 0
        %1183 = vmatprep.subr.bf16.mxu0 0
        %1184 = vmatpush1.bf16.msra.mxu0 0
        %1185 = vmatprep.subr.bf16.mxu0 0
        %1186 = vmatpush1.bf16.msra.mxu0 0
        %1187 = vmatprep.subr.bf16.mxu0 0
        %1188 = vmatpush1.bf16.msra.mxu0 0
        %1189 = vmatprep.mubr.bf16.mxu0 0
        %1190 = vmatmul.mubr.bf16.gmra.mrb[0].mxu0 %v1057
        %v1191 = vpop.f32.mrb[0].mxu0
        %v1192 = vadd.f32 0.0, %v1191
        %v1193 = vpop.f32.mrb[0].mxu0
        %v1194 = vadd.f32 0.0, %v1193
        %v1195 = vpop.f32.mrb[0].mxu0
        %v1196 = vadd.f32 0.0, %v1195
        %v1197 = vpop.f32.mrb[0].mxu0
        %v1198 = vadd.f32 0.0, %v1197
        %1199 = vmatprep.mubr.bf16.mxu0 0
        %1200 = vmatmul.mubr.bf16.gmra.mrb[0].mxu0 %v1058
        %v1201 = vpop.f32.mrb[0].mxu0
        %v1202 = vadd.f32 0.0, %v1201
        %v1203 = vpop.f32.mrb[0].mxu0
        %v1204 = vadd.f32 0.0, %v1203
        %v1205 = vpop.f32.mrb[0].mxu0
        %v1206 = vadd.f32 0.0, %v1205
        %v1207 = vpop.f32.mrb[0].mxu0
        %v1208 = vadd.f32 0.0, %v1207
        %1209 = vmatprep.mubr.bf16.mxu0 0
        %1210 = vmatmul.mubr.bf16.gmra.mrb[0].mxu0 %v1059
        %v1211 = vpop.f32.mrb[0].mxu0
        %v1212 = vadd.f32 0.0, %v1211
        %v1213 = vpop.f32.mrb[0].mxu0
        %v1214 = vadd.f32 0.0, %v1213
        %v1215 = vpop.f32.mrb[0].mxu0
        %v1216 = vadd.f32 0.0, %v1215
        %v1217 = vpop.f32.mrb[0].mxu0
        %v1218 = vadd.f32 0.0, %v1217
        %1219 = vmatprep.mubr.bf16.mxu0 0
        %1220 = vmatmul.mubr.bf16.gmra.mrb[0].mxu0 %v1060
        %v1221 = vpop.f32.mrb[0].mxu0
        %v1222 = vadd.f32 0.0, %v1221
        %v1223 = vpop.f32.mrb[0].mxu0
        %v1224 = vadd.f32 0.0, %v1223
        %v1225 = vpop.f32.mrb[0].mxu0
        %v1226 = vadd.f32 0.0, %v1225
        %v1227 = vpop.f32.mrb[0].mxu0
        %v1228 = vadd.f32 0.0, %v1227
        %1229 = vdwg.mxu0
        %v1230 = vadd.f32 %v793, %v1192
        %v1231 = vadd.f32 %v797, %v1196
        %v1232 = vadd.f32 %v803, %v1202
        %v1233 = vadd.f32 %v807, %v1206
        %v1234 = vadd.f32 %v813, %v1212
        %v1235 = vadd.f32 %v817, %v1216
        %v1236 = vadd.f32 %v823, %v1222
        %v1237 = vadd.f32 %v827, %v1226
        %v1238 = vld [vmem:[%s6] sm:$0x1]
        %v1240 = vlaneseq
        %v1241 = vshrl.u32 %v1240, 7
        %v1242 = vsub.s32 0, %v1241
        %v1243 = vrot.slane %v1238, %v1242
        %v1245 = vadd.f32 %v1230, %v1243
        %v1246 = vadd.f32 %v1231, %v1243
        %v1247 = vadd.f32 %v1232, %v1243
        %v1248 = vadd.f32 %v1233, %v1243
        %v1249 = vadd.f32 %v1234, %v1243
        %v1250 = vadd.f32 %v1235, %v1243
        %v1251 = vadd.f32 %v1236, %v1243
        %v1252 = vadd.f32 %v1237, %v1243
        %v1253 = vadd.f32 %v1049, %v1194
        %v1254 = vadd.f32 %v1050, %v1198
        %v1255 = vadd.f32 %v1051, %v1204
        %v1256 = vadd.f32 %v1052, %v1208
        %v1257 = vadd.f32 %v1053, %v1214
        %v1258 = vadd.f32 %v1054, %v1218
        %v1259 = vadd.f32 %v1055, %v1224
        %v1260 = vadd.f32 %v1056, %v1228
        %v1261 = vpack.c.bf16 %v1246, %v1245
        %v1262 = vpack.c.bf16 %v1248, %v1247
        %v1263 = vpack.c.bf16 %v1250, %v1249
        %v1264 = vpack.c.bf16 %v1252, %v1251
        %v1265 = vld [vmem:[#allocation10] sm:$0xff]
        %v1266 = vld [vmem:[#allocation10 + $0x8] sm:$0xff]
        %v1267 = vld [vmem:[#allocation10 + $0x10] sm:$0xff]
        %v1268 = vld [vmem:[#allocation10 + $0x18] sm:$0xff]
        %v1269 = vld [vmem:[#allocation10 + $0x20] sm:$0xff]
        %v1270 = vld [vmem:[#allocation10 + $0x28] sm:$0xff]
        %v1271 = vld [vmem:[#allocation10 + $0x30] sm:$0xff]
        %v1272 = vld [vmem:[#allocation10 + $0x38] sm:$0xff]
        %v1273 = vld [vmem:[#allocation10 + $0x40] sm:$0xff]
        %v1274 = vld [vmem:[#allocation10 + $0x48] sm:$0xff]
        %v1275 = vld [vmem:[#allocation10 + $0x50] sm:$0xff]
        %v1276 = vld [vmem:[#allocation10 + $0x58] sm:$0xff]
        %v1277 = vld [vmem:[#allocation10 + $0x60] sm:$0xff]
        %v1278 = vld [vmem:[#allocation10 + $0x68] sm:$0xff]
        %v1279 = vld [vmem:[#allocation10 + $0x70] sm:$0xff]
        %v1280 = vld [vmem:[#allocation10 + $0x78] sm:$0xff]
        %v1297 = vunpack.c.l.b16 %v1265
        %v1298 = vunpack.c.h.b16 %v1265
        %v1299 = vunpack.c.l.b16 %v1266
        %v1300 = vunpack.c.h.b16 %v1266
        %v1301 = vunpack.c.l.b16 %v1267
        %v1302 = vunpack.c.h.b16 %v1267
        %v1303 = vunpack.c.l.b16 %v1268
        %v1304 = vunpack.c.h.b16 %v1268
        %v1305 = vunpack.c.l.b16 %v1269
        %v1306 = vunpack.c.h.b16 %v1269
        %v1307 = vunpack.c.l.b16 %v1270
        %v1308 = vunpack.c.h.b16 %v1270
        %v1309 = vunpack.c.l.b16 %v1271
        %v1310 = vunpack.c.h.b16 %v1271
        %v1311 = vunpack.c.l.b16 %v1272
        %v1312 = vunpack.c.h.b16 %v1272
        %v1313 = vunpack.c.l.b16 %v1273
        %v1314 = vunpack.c.h.b16 %v1273
        %v1315 = vunpack.c.l.b16 %v1274
        %v1316 = vunpack.c.h.b16 %v1274
        %v1317 = vunpack.c.l.b16 %v1275
        %v1318 = vunpack.c.h.b16 %v1275
        %v1319 = vunpack.c.l.b16 %v1276
        %v1320 = vunpack.c.h.b16 %v1276
        %v1321 = vunpack.c.l.b16 %v1277
        %v1322 = vunpack.c.h.b16 %v1277
        %v1323 = vunpack.c.l.b16 %v1278
        %v1324 = vunpack.c.h.b16 %v1278
        %v1325 = vunpack.c.l.b16 %v1279
        %v1326 = vunpack.c.h.b16 %v1279
        %v1327 = vunpack.c.l.b16 %v1280
        %v1328 = vunpack.c.h.b16 %v1280
        %v1329 = vpack.c.b16 %v1299, %v1297
        %v1330 = vpack.c.b16 %v1300, %v1298
        %v1331 = vpack.c.b16 %v1303, %v1301
        %v1332 = vpack.c.b16 %v1304, %v1302
        %v1333 = vpack.c.b16 %v1307, %v1305
        %v1334 = vpack.c.b16 %v1308, %v1306
        %v1335 = vpack.c.b16 %v1311, %v1309
        %v1336 = vpack.c.b16 %v1312, %v1310
        %v1337 = vpack.c.b16 %v1315, %v1313
        %v1338 = vpack.c.b16 %v1316, %v1314
        %v1339 = vpack.c.b16 %v1319, %v1317
        %v1340 = vpack.c.b16 %v1320, %v1318
        %v1341 = vpack.c.b16 %v1323, %v1321
        %v1342 = vpack.c.b16 %v1324, %v1322
        %v1343 = vpack.c.b16 %v1327, %v1325
        %v1344 = vpack.c.b16 %v1328, %v1326
        %1361 = vmatprep.subr.bf16.mxu0 %v1330
        %1362 = vmatpush1.bf16.msra.mxu0 %v1329
        %1363 = vmatprep.subr.bf16.mxu0 %v1332
        %1364 = vmatpush1.bf16.msra.mxu0 %v1331
        %1365 = vmatprep.subr.bf16.mxu0 %v1334
        %1366 = vmatpush1.bf16.msra.mxu0 %v1333
        %1367 = vmatprep.subr.bf16.mxu0 %v1336
        %1368 = vmatpush1.bf16.msra.mxu0 %v1335
        %1369 = vmatprep.subr.bf16.mxu0 %v1338
        %1370 = vmatpush1.bf16.msra.mxu0 %v1337
        %1371 = vmatprep.subr.bf16.mxu0 %v1340
        %1372 = vmatpush1.bf16.msra.mxu0 %v1339
        %1373 = vmatprep.subr.bf16.mxu0 %v1342
        %1374 = vmatpush1.bf16.msra.mxu0 %v1341
        %1375 = vmatprep.subr.bf16.mxu0 %v1344
        %1376 = vmatpush1.bf16.msra.mxu0 %v1343
        %1377 = vmatprep.subr.bf16.mxu0 0
        %1378 = vmatpush1.bf16.msra.mxu0 0
        %1379 = vmatprep.subr.bf16.mxu0 0
        %1380 = vmatpush1.bf16.msra.mxu0 0
        %1381 = vmatprep.subr.bf16.mxu0 0
        %1382 = vmatpush1.bf16.msra.mxu0 0
        %1383 = vmatprep.subr.bf16.mxu0 0
        %1384 = vmatpush1.bf16.msra.mxu0 0
        %1385 = vmatprep.subr.bf16.mxu0 0
        %1386 = vmatpush1.bf16.msra.mxu0 0
        %1387 = vmatprep.subr.bf16.mxu0 0
        %1388 = vmatpush1.bf16.msra.mxu0 0
        %1389 = vmatprep.subr.bf16.mxu0 0
        %1390 = vmatpush1.bf16.msra.mxu0 0
        %1391 = vmatprep.subr.bf16.mxu0 0
        %1392 = vmatpush1.bf16.msra.mxu0 0
        %1393 = vmatprep.mubr.bf16.mxu0 0
        %1394 = vmatmul.mubr.bf16.gmra.mrb[0].mxu0 %v1261
        %v1395 = vpop.f32.mrb[0].mxu0
        %v1396 = vadd.f32 0.0, %v1395
        %v1397 = vpop.f32.mrb[0].mxu0
        %v1398 = vadd.f32 0.0, %v1397
        %v1399 = vpop.f32.mrb[0].mxu0
        %v1400 = vadd.f32 0.0, %v1399
        %v1401 = vpop.f32.mrb[0].mxu0
        %v1402 = vadd.f32 0.0, %v1401
        %1403 = vmatprep.mubr.bf16.mxu0 0
        %1404 = vmatmul.mubr.bf16.gmra.mrb[0].mxu0 %v1262
        %v1405 = vpop.f32.mrb[0].mxu0
        %v1406 = vadd.f32 0.0, %v1405
        %v1407 = vpop.f32.mrb[0].mxu0
        %v1408 = vadd.f32 0.0, %v1407
        %v1409 = vpop.f32.mrb[0].mxu0
        %v1410 = vadd.f32 0.0, %v1409
        %v1411 = vpop.f32.mrb[0].mxu0
        %v1412 = vadd.f32 0.0, %v1411
        %1413 = vmatprep.mubr.bf16.mxu0 0
        %1414 = vmatmul.mubr.bf16.gmra.mrb[0].mxu0 %v1263
        %v1415 = vpop.f32.mrb[0].mxu0
        %v1416 = vadd.f32 0.0, %v1415
        %v1417 = vpop.f32.mrb[0].mxu0
        %v1418 = vadd.f32 0.0, %v1417
        %v1419 = vpop.f32.mrb[0].mxu0
        %v1420 = vadd.f32 0.0, %v1419
        %v1421 = vpop.f32.mrb[0].mxu0
        %v1422 = vadd.f32 0.0, %v1421
        %1423 = vmatprep.mubr.bf16.mxu0 0
        %1424 = vmatmul.mubr.bf16.gmra.mrb[0].mxu0 %v1264
        %v1425 = vpop.f32.mrb[0].mxu0
        %v1426 = vadd.f32 0.0, %v1425
        %v1427 = vpop.f32.mrb[0].mxu0
        %v1428 = vadd.f32 0.0, %v1427
        %v1429 = vpop.f32.mrb[0].mxu0
        %v1430 = vadd.f32 0.0, %v1429
        %v1431 = vpop.f32.mrb[0].mxu0
        %v1432 = vadd.f32 0.0, %v1431
        %1433 = vdwg.mxu0
        %v1434 = vadd.f32 %v795, %v1396
        %v1435 = vadd.f32 %v799, %v1400
        %v1436 = vadd.f32 %v805, %v1406
        %v1437 = vadd.f32 %v809, %v1410
        %v1438 = vadd.f32 %v815, %v1416
        %v1439 = vadd.f32 %v819, %v1420
        %v1440 = vadd.f32 %v825, %v1426
        %v1441 = vadd.f32 %v829, %v1430
        %v1442 = vld [vmem:[%s8] sm:$0x1]
        %v1444 = vlaneseq
        %v1445 = vshrl.u32 %v1444, 7
        %v1446 = vsub.s32 0, %v1445
        %v1447 = vrot.slane %v1442, %v1446
        %v1449 = vadd.f32 %v1434, %v1447
        %v1450 = vadd.f32 %v1435, %v1447
        %v1451 = vadd.f32 %v1436, %v1447
        %v1452 = vadd.f32 %v1437, %v1447
        %v1453 = vadd.f32 %v1438, %v1447
        %v1454 = vadd.f32 %v1439, %v1447
        %v1455 = vadd.f32 %v1440, %v1447
        %v1456 = vadd.f32 %v1441, %v1447
        %v1457 = vadd.f32 %v1253, %v1398
        %v1458 = vadd.f32 %v1254, %v1402
        %v1459 = vadd.f32 %v1255, %v1408
        %v1460 = vadd.f32 %v1256, %v1412
        %v1461 = vadd.f32 %v1257, %v1418
        %v1462 = vadd.f32 %v1258, %v1422
        %v1463 = vadd.f32 %v1259, %v1428
        %v1464 = vadd.f32 %v1260, %v1432
        %v1465 = vpack.c.bf16 %v1450, %v1449
        %v1466 = vpack.c.bf16 %v1452, %v1451
        %v1467 = vpack.c.bf16 %v1454, %v1453
        %v1468 = vpack.c.bf16 %v1456, %v1455
        %v1469 = vld [vmem:[#allocation11] sm:$0xf]
        %v1470 = vld [vmem:[#allocation11 + $0x4] sm:$0xf]
        %v1471 = vld [vmem:[#allocation11 + $0x8] sm:$0xf]
        %v1472 = vld [vmem:[#allocation11 + $0xc] sm:$0xf]
        %v1473 = vld [vmem:[#allocation11 + $0x10] sm:$0xf]
        %v1474 = vld [vmem:[#allocation11 + $0x14] sm:$0xf]
        %v1475 = vld [vmem:[#allocation11 + $0x18] sm:$0xf]
        %v1476 = vld [vmem:[#allocation11 + $0x1c] sm:$0xf]
        %v1477 = vld [vmem:[#allocation11 + $0x20] sm:$0xf]
        %v1478 = vld [vmem:[#allocation11 + $0x24] sm:$0xf]
        %v1479 = vld [vmem:[#allocation11 + $0x28] sm:$0xf]
        %v1480 = vld [vmem:[#allocation11 + $0x2c] sm:$0xf]
        %v1481 = vld [vmem:[#allocation11 + $0x30] sm:$0xf]
        %v1482 = vld [vmem:[#allocation11 + $0x34] sm:$0xf]
        %v1483 = vld [vmem:[#allocation11 + $0x38] sm:$0xf]
        %v1484 = vld [vmem:[#allocation11 + $0x3c] sm:$0xf]
        %v1501 = vunpack.c.l.b16 %v1469
        %v1502 = vunpack.c.l.b16 %v1470
        %v1503 = vunpack.c.l.b16 %v1471
        %v1504 = vunpack.c.l.b16 %v1472
        %v1505 = vunpack.c.l.b16 %v1473
        %v1506 = vunpack.c.l.b16 %v1474
        %v1507 = vunpack.c.l.b16 %v1475
        %v1508 = vunpack.c.l.b16 %v1476
        %v1509 = vunpack.c.l.b16 %v1477
        %v1510 = vunpack.c.l.b16 %v1478
        %v1511 = vunpack.c.l.b16 %v1479
        %v1512 = vunpack.c.l.b16 %v1480
        %v1513 = vunpack.c.l.b16 %v1481
        %v1514 = vunpack.c.l.b16 %v1482
        %v1515 = vunpack.c.l.b16 %v1483
        %v1516 = vunpack.c.l.b16 %v1484
        %v1517 = vpack.c.b16 %v1502, %v1501
        %v1518 = vpack.c.b16 %v1504, %v1503
        %v1519 = vpack.c.b16 %v1506, %v1505
        %v1520 = vpack.c.b16 %v1508, %v1507
        %v1521 = vpack.c.b16 %v1510, %v1509
        %v1522 = vpack.c.b16 %v1512, %v1511
        %v1523 = vpack.c.b16 %v1514, %v1513
        %v1524 = vpack.c.b16 %v1516, %v1515
        %1533 = vmatprep.subr.bf16.mxu0 0
        %1534 = vmatpush1.bf16.msra.mxu0 %v1517
        %1535 = vmatprep.subr.bf16.mxu0 0
        %1536 = vmatpush1.bf16.msra.mxu0 %v1518
        %1537 = vmatprep.subr.bf16.mxu0 0
        %1538 = vmatpush1.bf16.msra.mxu0 %v1519
        %1539 = vmatprep.subr.bf16.mxu0 0
        %1540 = vmatpush1.bf16.msra.mxu0 %v1520
        %1541 = vmatprep.subr.bf16.mxu0 0
        %1542 = vmatpush1.bf16.msra.mxu0 %v1521
        %1543 = vmatprep.subr.bf16.mxu0 0
        %1544 = vmatpush1.bf16.msra.mxu0 %v1522
        %1545 = vmatprep.subr.bf16.mxu0 0
        %1546 = vmatpush1.bf16.msra.mxu0 %v1523
        %1547 = vmatprep.subr.bf16.mxu0 0
        %1548 = vmatpush1.bf16.msra.mxu0 %v1524
        %1549 = vmatprep.subr.bf16.mxu0 0
        %1550 = vmatpush1.bf16.msra.mxu0 0
        %1551 = vmatprep.subr.bf16.mxu0 0
        %1552 = vmatpush1.bf16.msra.mxu0 0
        %1553 = vmatprep.subr.bf16.mxu0 0
        %1554 = vmatpush1.bf16.msra.mxu0 0
        %1555 = vmatprep.subr.bf16.mxu0 0
        %1556 = vmatpush1.bf16.msra.mxu0 0
        %1557 = vmatprep.subr.bf16.mxu0 0
        %1558 = vmatpush1.bf16.msra.mxu0 0
        %1559 = vmatprep.subr.bf16.mxu0 0
        %1560 = vmatpush1.bf16.msra.mxu0 0
        %1561 = vmatprep.subr.bf16.mxu0 0
        %1562 = vmatpush1.bf16.msra.mxu0 0
        %1563 = vmatprep.subr.bf16.mxu0 0
        %1564 = vmatpush1.bf16.msra.mxu0 0
        %1565 = vmatprep.mubr.bf16.mxu0 0
        %1566 = vmatmul.mubr.bf16.gmra.mrb[0].mxu0 %v1465
        %v1567 = vpop.f32.mrb[0].mxu0
        %v1568 = vadd.f32 0.0, %v1567
        %v1569 = vpop.f32.mrb[0].mxu0
        %v1570 = vpop.f32.mrb[0].mxu0
        %v1571 = vadd.f32 0.0, %v1570
        %v1572 = vpop.f32.mrb[0].mxu0
        %1573 = vmatprep.mubr.bf16.mxu0 0
        %1574 = vmatmul.mubr.bf16.gmra.mrb[0].mxu0 %v1466
        %v1575 = vpop.f32.mrb[0].mxu0
        %v1576 = vadd.f32 0.0, %v1575
        %v1577 = vpop.f32.mrb[0].mxu0
        %v1578 = vpop.f32.mrb[0].mxu0
        %v1579 = vadd.f32 0.0, %v1578
        %v1580 = vpop.f32.mrb[0].mxu0
        %1581 = vmatprep.mubr.bf16.mxu0 0
        %1582 = vmatmul.mubr.bf16.gmra.mrb[0].mxu0 %v1467
        %v1583 = vpop.f32.mrb[0].mxu0
        %v1584 = vadd.f32 0.0, %v1583
        %v1585 = vpop.f32.mrb[0].mxu0
        %v1586 = vpop.f32.mrb[0].mxu0
        %v1587 = vadd.f32 0.0, %v1586
        %v1588 = vpop.f32.mrb[0].mxu0
        %1589 = vmatprep.mubr.bf16.mxu0 0
        %1590 = vmatmul.mubr.bf16.gmra.mrb[0].mxu0 %v1468
        %v1591 = vpop.f32.mrb[0].mxu0
        %v1592 = vadd.f32 0.0, %v1591
        %v1593 = vpop.f32.mrb[0].mxu0
        %v1594 = vpop.f32.mrb[0].mxu0
        %v1595 = vadd.f32 0.0, %v1594
        %v1596 = vpop.f32.mrb[0].mxu0
        %1597 = vdwg.mxu0
        %v1598 = vadd.f32 %v1457, %v1568
        %v1599 = vadd.f32 %v1458, %v1571
        %v1600 = vadd.f32 %v1459, %v1576
        %v1601 = vadd.f32 %v1460, %v1579
        %v1602 = vadd.f32 %v1461, %v1584
        %v1603 = vadd.f32 %v1462, %v1587
        %v1604 = vadd.f32 %v1463, %v1592
        %v1605 = vadd.f32 %v1464, %v1595
        %1606 = vst [vmem:[%s477] sm:$0xff] %v1598
        %1607 = vst [vmem:[%s477 + $0x8] sm:$0xff] %v1599
        %1608 = vst [vmem:[%s477 + $0x10] sm:$0xff] %v1600
        %1609 = vst [vmem:[%s477 + $0x18] sm:$0xff] %v1601
        %1610 = vst [vmem:[%s477 + $0x20] sm:$0xff] %v1602
        %1611 = vst [vmem:[%s477 + $0x28] sm:$0xff] %v1603
        %1612 = vst [vmem:[%s477 + $0x30] sm:$0xff] %v1604
        %1613 = vst [vmem:[%s477 + $0x38] sm:$0xff] %v1605
        %s1614 = sand.u32 %s275, 1
        %s1615 = scalar_lea.sflag [#allocation4], %s1614
        %s1616 = sand.u32 %s275, 1
        %s1617 = smul.addr %s1616, 64
        %s1618 = scalar_lea.vmem [#allocation13], %s1617
        // Predicated region
        $region89: #{tpu_custom_call.1} parent=63 // pred_check
          %p1619 = pneg %p285
        $region90: #{tpu_custom_call.1} parent=63 // pred_check_branch
          %1621 = sbr.rel (%p1619) target = $region92
        $region91: #{tpu_custom_call.1} parent=63 // pred_region
          %s1622 = smul.u32 8, %s31
          %s1624 = ssub.s32 1024, 1024
          %1625 = vsyncadd %s1615, %s1624
          %s1626 = smul.addr %s1622, 128
          %s1627 = scalar_lea.hbm %s11, %s1626
          %s1628 = sshll.u32 %s1618, 4
          %s1629 = int_to_ptr.vmem [resolvable:$true] %s1628
          %1634 = dma.vmem_to_hbm [thread:$0]  %s1629, 1024, %s1627, %s1615, 128, 128, 8
        $region92: #{tpu_custom_call.1} parent=63 // pred_fallthru
          _
      $region64: #{tpu_custom_call.1} parent=5 // pred_fallthru
        _
      %p1635 = scmp.le.s32.totalorder 2, %s26
      // Predicated region
      $region93: #{tpu_custom_call.1} parent=5 // pred_check
        %p1636 = pneg %p1635
      $region94: #{tpu_custom_call.1} parent=5 // pred_check_branch
        %1638 = sbr.rel (%p1636) target = $region96
      $region95: #{tpu_custom_call.1} parent=5 // pred_region
        %s1639 = ssub.s32 %s26, 2
        // Predicated region
        $region97: #{tpu_custom_call.1} parent=95 // pred_check
          %p1640 = pneg %p291
        $region98: #{tpu_custom_call.1} parent=95 // pred_check_branch
          %1642 = sbr.rel (%p1640) target = $region100
        $region99: #{tpu_custom_call.1} parent=95 // pred_region
          %s1643 = sand.u32 %s276, 1
          %s1644 = scalar_lea.sflag [#allocation4], %s1643
          %s1645 = sand.u32 %s276, 1
          %s1646 = smul.addr %s1645, 64
          %s1647 = scalar_lea.vmem [#allocation13], %s1646
          %1648 = dma.done %s1644, 1024
        $region100: #{tpu_custom_call.1} parent=95 // pred_fallthru
          _
      $region96: #{tpu_custom_call.1} parent=5 // pred_fallthru
        _
    $region6: #{tpu_custom_call.1} parent=1 // loop_footer
      %s30 = sadd.s32 1, %s26
    $region7: #{tpu_custom_call.1} parent=1 // loop_footer_branch
      %25 = sbr.rel target = $region3
    $region8: #{tpu_custom_call.1} parent=1 // loop_exit
      _
    %1649 = vsyncpa [#allocation3], 1
    %s1650 = scalar_lea.sflag [#allocation3], 1
    %1651 = vsyncpa %s1650, 1
    %1652 = vsyncpa [#allocation6], 1
    %1653 = vsyncpa [#allocation9], 1
    %1654 = vsyncpa [#allocation12], 1
    %1655 = vsyncpa [#allocation4], 1
    %s1656 = scalar_lea.sflag [#allocation4], 1
    %1657 = vsyncpa %s1656, 1

</llo_original>
